<compile_context>
chip_gen: v7x
topology: tpu7x:2x2x1
jax: 0.10.0
libtpu: 0.0.40
codegen_flags: <defaults>
</compile_context>

<pallas_src>
import functools
import math

import jax
import jax.numpy as jnp
from jax.experimental import pallas as pl
from jax.experimental.pallas import tpu as pltpu


_VMEM_LIMIT = 32 * 1024 * 1024  # explicit scoped-VMEM budget (portable incl. v7x)


def _round_up(x, m):
    return (x + m - 1) // m * m


# ------------------------------ Matmul kernel ------------------------------

def _matmul_kernel(a_ref, b_ref, o_ref, acc_ref):
    @pl.when(pl.program_id(2) == 0)
    def _():
        acc_ref[...] = jnp.zeros_like(acc_ref)

    acc_ref[...] += jnp.dot(a_ref[...], b_ref[...],
                            preferred_element_type=jnp.float32)

    @pl.when(pl.program_id(2) == pl.num_programs(2) - 1)
    def _():
        o_ref[...] = acc_ref[...].astype(o_ref.dtype)


def pallas_matmul(a, b, out_dtype=jnp.bfloat16):
    """(M, K) @ (K, N) on the MXU. bf16 inputs, f32 accumulation, bf16 output.

    M tiled (up to 512 rows), N padded to a multiple of 128 (lane-dense stores)
    and tiled, K tiled when 128-aligned (otherwise kept resident - still bounded
    at the channel widths of this network).
    """
    M, K = a.shape
    _, N = b.shape
    a = a.astype(jnp.bfloat16)
    b = b.astype(jnp.bfloat16)

    # Lane-dense output: pad cout up to a multiple of 128 and slice afterwards.
    Np = _round_up(N, 128)
    if Np != N:
        b = jnp.pad(b, ((0, 0), (0, Np - N)))

    # M tiling.
    Mp8 = _round_up(M, 8)
    tm = min(512, Mp8)
    Mp = _round_up(M, tm)
    if Mp != M:
        a = jnp.pad(a, ((0, Mp - M), (0, 0)))

    # N tiling (Np is always a multiple of 128).
    if Np % 512 == 0:
        tn = 512
    elif Np % 256 == 0:
        tn = 256
    else:
        tn = 128
    tn = min(tn, Np)

    # K tiling: only tile when 128-aligned, otherwise keep K resident
    # (required by the (8,128) layout rule: a's minor dim must be a multiple
    # of 128 or the full array dim).
    if K % 512 == 0:
        tk = 512
    elif K % 256 == 0:
        tk = 256
    elif K % 128 == 0:
        tk = 128
    else:
        tk = K

    grid = (Mp // tm, Np // tn, K // tk)
    out = pl.pallas_call(
        _matmul_kernel,
        out_shape=jax.ShapeDtypeStruct((Mp, Np), out_dtype),
        grid=grid,
        in_specs=[
            pl.BlockSpec((tm, tk), lambda i, j, k: (i, k)),
            pl.BlockSpec((tk, tn), lambda i, j, k: (k, j)),
        ],
        out_specs=pl.BlockSpec((tm, tn), lambda i, j, k: (i, j)),
        scratch_shapes=[pltpu.VMEM((tm, tn), jnp.float32)],
        compiler_params=pltpu.CompilerParams(
            dimension_semantics=("parallel", "parallel", "arbitrary"),
            vmem_limit_bytes=_VMEM_LIMIT),
    )(a, b)
    if Mp != M or Np != N:
        out = out[:M, :N]
    return out


# -------------------------- GroupNorm (+fused add/ReLU) ---------------------

def _gn_kernel(x_ref, g_ref, b_ref, agg_ref, spread_ref, *rest,
               eps, denom, relu, fuse_add):
    # x block: (1, H*W, C) for one sample. Group statistics are computed with
    # one-hot matmuls (agg: C->G, spread: G->C) so the reduction stays on the
    # MXU; variance is two-pass (sum of (x-mean)^2) for numerical safety.
    if fuse_add:
        r_ref, o_ref = rest
    else:
        (o_ref,) = rest

    x = x_ref[0].astype(jnp.float32)                        # (HW, C)
    agg = agg_ref[...]                                      # (C, G) one-hot
    spread = spread_ref[...]                                # (G, C) one-hot

    s1 = jnp.sum(x, axis=0, keepdims=True)                  # (1, C)
    mean_g = jnp.dot(s1, agg, preferred_element_type=jnp.float32) / denom
    mean_c = jnp.dot(mean_g, spread, preferred_element_type=jnp.float32)

    d = x - mean_c
    s2 = jnp.sum(d * d, axis=0, keepdims=True)              # (1, C)
    var_g = jnp.dot(s2, agg, preferred_element_type=jnp.float32) / denom
    inv_g = jax.lax.rsqrt(var_g + eps)                      # EUP path
    inv_c = jnp.dot(inv_g, spread, preferred_element_type=jnp.float32)

    y = d * inv_c * g_ref[...] + b_ref[...]
    if fuse_add:
        y = y + r_ref[0].astype(jnp.float32)
    if relu or fuse_add:
        y = jnp.maximum(y, 0.0)
    o_ref[0] = y.astype(o_ref.dtype)


def group_norm(x, gamma, beta, num_groups, eps, relu=False, residual=None,
               out_dtype=jnp.bfloat16):
    """GroupNorm over NHWC input; optionally fuses `relu(out + residual)`."""
    # TODO(synk): for very large H*W (production resolutions on v7x), switch to
    # an HW-tiled two-pass variant so the per-sample block is not VMEM-resident.
    N, H, W, C = x.shape
    cg = C // num_groups
    hw = H * W
    x2 = x.reshape(N, hw, C)
    ch = jnp.arange(C)
    agg = (ch[:, None] // cg == jnp.arange(num_groups)[None, :]).astype(jnp.float32)
    spread = agg.T
    fuse_add = residual is not None

    kernel = functools.partial(_gn_kernel, eps=float(eps),
                               denom=float(hw * cg), relu=relu,
                               fuse_add=fuse_add)
    in_specs = [
        pl.BlockSpec((1, hw, C), lambda n: (n, 0, 0)),
        pl.BlockSpec((1, C), lambda n: (0, 0)),
        pl.BlockSpec((1, C), lambda n: (0, 0)),
        pl.BlockSpec((C, num_groups), lambda n: (0, 0)),
        pl.BlockSpec((num_groups, C), lambda n: (0, 0)),
    ]
    args = [x2, gamma.reshape(1, C).astype(jnp.float32),
            beta.reshape(1, C).astype(jnp.float32), agg, spread]
    if fuse_add:
        in_specs.append(pl.BlockSpec((1, hw, C), lambda n: (n, 0, 0)))
        args.append(residual.reshape(N, hw, C))

    out = pl.pallas_call(
        kernel,
        out_shape=jax.ShapeDtypeStruct((N, hw, C), out_dtype),
        grid=(N,),
        in_specs=in_specs,
        out_specs=pl.BlockSpec((1, hw, C), lambda n: (n, 0, 0)),
        compiler_params=pltpu.CompilerParams(
            dimension_semantics=("parallel",),
            vmem_limit_bytes=_VMEM_LIMIT),
    )(*args)
    return out.reshape(N, H, W, C)


# ------------------------------ Max pooling ---------------------------------

def _max3_kernel(a_ref, b_ref, c_ref, o_ref):
    o_ref[...] = jnp.maximum(jnp.maximum(a_ref[...], b_ref[...]), c_ref[...])


def _max3(a, b, c):
    """Elementwise max of three (N, R, Q) arrays, gridded over the batch dim."""
    N, R, Q = a.shape
    spec = pl.BlockSpec((1, R, Q), lambda n: (n, 0, 0))
    return pl.pallas_call(
        _max3_kernel,
        out_shape=jax.ShapeDtypeStruct((N, R, Q), a.dtype),
        grid=(N,),
        in_specs=[spec, spec, spec],
        out_specs=spec,
        compiler_params=pltpu.CompilerParams(
            dimension_semantics=("parallel",),
            vmem_limit_bytes=_VMEM_LIMIT),
    )(a, b, c)


def max_pool_3x3_s2(x):
    """MaxPool2d(kernel_size=3, stride=2, padding=0), NHWC, as a separable
    reduction: row-max of 3 then col-max of 3 (no 9x window stack in HBM)."""
    N, H, W, C = x.shape
    oh = (H - 3) // 2 + 1
    ow = (W - 3) // 2 + 1
    rows = [x[:, i:i + 2 * (oh - 1) + 1:2, :, :].reshape(N, oh, W * C)
            for i in range(3)]
    rmax = _max3(*rows).reshape(N, oh, W, C)
    cols = [rmax[:, :, j:j + 2 * (ow - 1) + 1:2, :].reshape(N, oh, ow * C)
            for j in range(3)]
    return _max3(*cols).reshape(N, oh, ow, C)


# ------------------------------ Conv wrappers --------------------------------

def _standardize_weight(w):
    # StdConv2d: standardize weight per output channel (unbiased=False, eps=1e-5),
    # then cast to bf16 for the MXU. Done once per parameter set (preprocess).
    mean = jnp.mean(w, axis=(0, 1, 2), keepdims=True)
    var = jnp.var(w, axis=(0, 1, 2), keepdims=True)
    return ((w - mean) / jnp.sqrt(var + 1e-5)).astype(jnp.bfloat16)


def conv2d(x, w, stride, padding):
    """Conv (no bias). x: NHWC bf16, w: HWIO bf16 (already standardized).

    1x1 convs: plain flatten + matmul (no im2col).
    kxk convs: bf16 im2col in JAX glue + tiled Pallas MXU matmul.
    """
    kh, kw, cin, cout = w.shape
    if kh == 1 and kw == 1 and padding == 0:
        if stride != 1:
            x = x[:, ::stride, ::stride, :]
        N, H, W, _ = x.shape
        out = pallas_matmul(x.reshape(N * H * W, cin), w.reshape(cin, cout))
        return out.reshape(N, H, W, cout)

    if padding:
        x = jnp.pad(x, ((0, 0), (padding, padding), (padding, padding), (0, 0)))
    N, H, W, _ = x.shape
    oh = (H - kh) // stride + 1
    ow = (W - kw) // stride + 1
    cols = []
    for i in range(kh):
        for j in range(kw):
            cols.append(x[:, i:i + stride * (oh - 1) + 1:stride,
                          j:j + stride * (ow - 1) + 1:stride, :])
    patches = jnp.stack(cols, axis=3)                  # (N, oh, ow, kh*kw, cin)
    a = patches.reshape(N * oh * ow, kh * kw * cin)
    out = pallas_matmul(a, w.reshape(kh * kw * cin, cout))
    return out.reshape(N, oh, ow, cout)


# ------------------------------- Parameters ----------------------------------

def _conv_w(key, kh, kw, cin, cout):
    fan_in = kh * kw * cin
    return jax.random.normal(key, (kh, kw, cin, cout), jnp.float32) / math.sqrt(fan_in)


def _gn_p(c):
    # PyTorch GroupNorm default affine init: weight=1, bias=0.
    return jnp.ones((c,), jnp.float32), jnp.zeros((c,), jnp.float32)


def init_bottleneck(key, cin, cout, cmid, stride):
    keys = jax.random.split(key, 4)
    p = {
        'conv1': _conv_w(keys[0], 1, 1, cin, cmid),
        'gn1': _gn_p(cmid),
        'conv2': _conv_w(keys[1], 3, 3, cmid, cmid),
        'gn2': _gn_p(cmid),
        'conv3': _conv_w(keys[2], 1, 1, cmid, cout),
        'gn3': _gn_p(cout),
        'stride': stride,
    }
    if stride != 1 or cin != cout:
        p['downsample'] = _conv_w(keys[3], 1, 1, cin, cout)
        p['gn_proj'] = _gn_p(cout)
    return p


def init_resnet_v2(key, block_units, width_factor):
    width = int(64 * width_factor)
    kroot, kb1, kb2, kb3 = jax.random.split(key, 4)
    params = {
        'root': {'conv': _conv_w(kroot, 7, 7, 3, width), 'gn': _gn_p(width)},
        'body': [],
    }
    block_cfg = [
        (width, width * 4, width, 1),
        (width * 4, width * 8, width * 2, 2),
        (width * 8, width * 16, width * 4, 2),
    ]
    for bkey, (cin, cout, cmid, stride), nunits in zip(
            (kb1, kb2, kb3), block_cfg, block_units):
        ukeys = jax.random.split(bkey, nunits)
        units = [init_bottleneck(ukeys[0], cin, cout, cmid, stride)]
        for u in range(1, nunits):
            units.append(init_bottleneck(ukeys[u], cout, cout, cmid, 1))
        params['body'].append(units)
    return params, width


def preprocess_params(params):
    """Hoisted out of the forward path: weight standardization + bf16 cast."""
    def prep_unit(p):
        q = dict(p)
        for k in ('conv1', 'conv2', 'conv3', 'downsample'):
            if k in q:
                q[k] = _standardize_weight(q[k])
        return q
    return {
        'root': {'conv': _standardize_weight(params['root']['conv']),
                 'gn': params['root']['gn']},
        'body': [[prep_unit(u) for u in blk] for blk in params['body']],
    }


# --------------------------------- Forward -----------------------------------

def bottleneck_forward(p, x):
    # PreActBottleneck (TransUNet variant): relu(gn3(conv3(...)) + residual),
    # with the residual add + ReLU fused into the gn3 Pallas kernel.
    stride = p['stride']
    if 'downsample' in p:
        residual = conv2d(x, p['downsample'], stride, 0)
        residual = group_norm(residual, *p['gn_proj'],
                              num_groups=residual.shape[-1], eps=1e-5)
    else:
        residual = x
    y = conv2d(x, p['conv1'], 1, 0)
    y = group_norm(y, *p['gn1'], num_groups=32, eps=1e-6, relu=True)
    y = conv2d(y, p['conv2'], stride, 1)
    y = group_norm(y, *p['gn2'], num_groups=32, eps=1e-6, relu=True)
    y = conv2d(y, p['conv3'], 1, 0)
    return group_norm(y, *p['gn3'], num_groups=32, eps=1e-6, residual=residual)


def resnet_v2_forward(params, x_nchw):
    # layout: x_nchw is NCHW (PyTorch); internal compute NHWC bf16; outputs NCHW f32.
    b, c, in_size, _ = x_nchw.shape
    x = jnp.transpose(x_nchw, (0, 2, 3, 1)).astype(jnp.bfloat16)
    x = conv2d(x, params['root']['conv'], stride=2, padding=3)
    x = group_norm(x, *params['root']['gn'], num_groups=32, eps=1e-6, relu=True)
    features = [x]
    x = max_pool_3x3_s2(x)
    body = params['body']
    for i in range(len(body) - 1):
        for unit in body[i]:
            x = bottleneck_forward(unit, x)
        right_size = int(in_size / 4 / (i + 1))
        if x.shape[1] != right_size:
            pad = right_size - x.shape[1]
            assert 3 > pad > 0, f'x {x.shape} should {right_size}'
            feat = jnp.zeros((b, right_size, right_size, x.shape[3]), x.dtype)
            feat = feat.at[:, :x.shape[1], :x.shape[2], :].set(x)
        else:
            feat = x
        features.append(feat)
    for unit in body[-1]:
        x = bottleneck_forward(unit, x)
    to_nchw = lambda t: jnp.transpose(t, (0, 3, 1, 2)).astype(jnp.float32)
    return to_nchw(x), [to_nchw(f) for f in features[::-1]]


# ----------------------------------- Main -------------------------------------

if __name__ == "__main__":
    key = jax.random.PRNGKey(0)
    pkey, xkey = jax.random.split(key)

    block_units = (1, 1, 1)
    width_factor = 0.5          # width = 32 (GroupNorm(32, .) needs multiple of 32)
    params, width = init_resnet_v2(pkey, block_units, width_factor)
    params = preprocess_params(params)   # standardize + bf16-cast weights once

    # Small input consistent with the module: NCHW, 3 channels.
    x = jax.random.normal(xkey, (2, 3, 64, 64), jnp.float32)

    out, feats = resnet_v2_forward(params, x)
    out = jax.block_until_ready(out)
    feats = [jax.block_until_ready(f) for f in feats]

    # Shape checks mirroring the PyTorch forward.
    assert out.shape == (2, width * 16, 4, 4), out.shape
    assert [tuple(f.shape) for f in feats] == [
        (2, width * 8, 8, 8),
        (2, width * 4, 16, 16),
        (2, width, 32, 32),
    ], [tuple(f.shape) for f in feats]
    assert jnp.isfinite(out).all() and all(jnp.isfinite(f).all() for f in feats)
    print("KERNEL_OK")
</pallas_src>

<mosaic_0001>
module attributes {stable_mosaic.version = 11 : i64} {
  func.func @_matmul_kernel(%arg0: i32, %arg1: i32, %arg2: i32, %arg3: memref<512x147xbf16, #tpu.memory_space<vmem>>, %arg4: memref<147x128xbf16, #tpu.memory_space<vmem>>, %arg5: memref<512x128xbf16, #tpu.memory_space<vmem>>, %arg6: memref<512x128xf32, #tpu.memory_space<vmem>>) attributes {dimension_semantics = [#tpu.dimension_semantics<parallel>, #tpu.dimension_semantics<parallel>, #tpu.dimension_semantics<arbitrary>], iteration_bounds = array<i64: 4, 1, 1>, scalar_prefetch = 0 : i64, scratch_operands = 1 : i64, tpu.core_type = #tpu.core_type<tc>, window_params = [{transform_indices = @transform_0, window_bounds = array<i64: 512, 147>}, {transform_indices = @transform_1, window_bounds = array<i64: 147, 128>}, {transform_indices = @transform_2, window_bounds = array<i64: 512, 128>}]} {
    %c0_i32 = arith.constant 0 : i32
    %0 = arith.cmpi eq, %arg2, %c0_i32 : i32
    %1 = arith.extui %0 : i1 to i32
    %c0_i32_0 = arith.constant 0 : i32
    %2 = arith.cmpi ne, %1, %c0_i32_0 : i32
    scf.if %2 {
      %cst_10 = arith.constant 0.000000e+00 : f32
      %12 = vector.broadcast %cst_10 : f32 to vector<512x128xf32>
      %c0_11 = arith.constant 0 : index
      %c0_12 = arith.constant 0 : index
      %13 = vector.load %arg6[%c0_11, %c0_12] : memref<512x128xf32, #tpu.memory_space<vmem>>, vector<512x128xf32>
      tpu.vector_store %arg6[%c0_11, %c0_12], %12 {strides = array<i32>} : memref<512x128xf32, #tpu.memory_space<vmem>>, vector<512x128xf32>,
    } else {
    }
    %c0 = arith.constant 0 : index
    %c0_1 = arith.constant 0 : index
    %3 = vector.load %arg6[%c0, %c0_1] : memref<512x128xf32, #tpu.memory_space<vmem>>, vector<512x128xf32>
    %c0_2 = arith.constant 0 : index
    %c0_3 = arith.constant 0 : index
    %4 = vector.load %arg3[%c0_2, %c0_3] : memref<512x147xbf16, #tpu.memory_space<vmem>>, vector<512x147xbf16>
    %c0_4 = arith.constant 0 : index
    %c0_5 = arith.constant 0 : index
    %5 = vector.load %arg4[%c0_4, %c0_5] : memref<147x128xbf16, #tpu.memory_space<vmem>>, vector<147x128xbf16>
    %cst = arith.constant dense<0.000000e+00> : vector<512x128xf32>
    %6 = tpu.matmul %4, %5, %cst {dimension_numbers = #tpu.dot_dimension_numbers<[1], [0], [0], [1], [0, 0, 1, 1], [], []>} : vector<512x147xbf16>, vector<147x128xbf16>, vector<512x128xf32> -> vector<512x128xf32>
    %7 = arith.addf %3, %6 : vector<512x128xf32>
    %c0_6 = arith.constant 0 : index
    %c0_7 = arith.constant 0 : index
    %8 = vector.load %arg6[%c0_6, %c0_7] : memref<512x128xf32, #tpu.memory_space<vmem>>, vector<512x128xf32>
    tpu.vector_store %arg6[%c0_6, %c0_7], %7 {strides = array<i32>} : memref<512x128xf32, #tpu.memory_space<vmem>>, vector<512x128xf32>,
    %c0_i32_8 = arith.constant 0 : i32
    %9 = arith.cmpi eq, %arg2, %c0_i32_8 : i32
    %10 = arith.extui %9 : i1 to i32
    %c0_i32_9 = arith.constant 0 : i32
    %11 = arith.cmpi ne, %10, %c0_i32_9 : i32
    scf.if %11 {
      %c0_10 = arith.constant 0 : index
      %c0_11 = arith.constant 0 : index
      %12 = vector.load %arg6[%c0_10, %c0_11] : memref<512x128xf32, #tpu.memory_space<vmem>>, vector<512x128xf32>
      %13 = arith.truncf %12 : vector<512x128xf32> to vector<512x128xbf16>
      %c0_12 = arith.constant 0 : index
      %c0_13 = arith.constant 0 : index
      %14 = vector.load %arg5[%c0_12, %c0_13] : memref<512x128xbf16, #tpu.memory_space<vmem>>, vector<512x128xbf16>
      tpu.vector_store %arg5[%c0_12, %c0_13], %13 {strides = array<i32>} : memref<512x128xbf16, #tpu.memory_space<vmem>>, vector<512x128xbf16>,
    } else {
    }
    return
  }
  func.func @transform_0(%arg0: i32, %arg1: i32, %arg2: i32) -> (i32, i32) {
    %c0_i32 = arith.constant 0 : i32
    return %arg0, %arg2 : i32, i32
  }
  func.func @transform_1(%arg0: i32, %arg1: i32, %arg2: i32) -> (i32, i32) {
    %c0_i32 = arith.constant 0 : i32
    return %arg2, %arg1 : i32, i32
  }
  func.func @transform_2(%arg0: i32, %arg1: i32, %arg2: i32) -> (i32, i32) {
    %c0_i32 = arith.constant 0 : i32
    return %arg0, %arg1 : i32, i32
  }
}

</mosaic_0001>

<llo_original>
// kernel: tpu_custom_call.1
$region0: #{tpu_custom_call.1}
  #allocation0 [shape = 'u32[]', space=smem, size = 0x4, offset = 0x4, fixed_abs, tag = 'smem constant byte address 0x4 - core index']
  #allocation1 [shape = 'u32[144,128]{1,0:T(1,128)}', space=vmem, size = 0x12000, scoped, tag = 'internal scratch']
  #allocation2 [shape = 'f32[512,128]{1,0:T(8,128)}', space=vmem, size = 0x40000, scoped, tag = 'scratch operand']
  %s0 = inlined_call_operand.vmem [shape: bf16[2048,147], index: 0, kind: input, shape index: {}]
  %s1 = inlined_call_operand.vmem [shape: bf16[147,128], index: 1, kind: input, shape index: {}]
  %s2 = inlined_call_operand.hbm [shape: bf16[2048,128], index: 2, kind: output, shape index: {}]
  %s3 = sld [smem:[#allocation0]]
  $region49: #{tpu_custom_call.1} parent=0
    _
  %s5 = ssub.s32 1, %s3
  %s6 = scalar_select 0, %s5, %s3
  $region1: #{tpu_custom_call.1} parent=0
    #allocation3 [shape = 'u8[262144]{0}', space=vmem, size = 0x40000, scoped, tag = 'output window, operand 0']
    #allocation4 [shape = 's32[2]{0}', space=sflag, size = 0x8, scoped, tag = 'scoped memory for tpu_custom_call.1']
    %7 = vsyncpa [#allocation4], 0
    %s8 = scalar_lea.sflag [#allocation4], 1
    %9 = vsyncpa %s8, 0
    loop: start=0, step=1, limit=6
    $region2: #{tpu_custom_call.1} parent=1 // loop_pre_header
      _
    $region3: #{tpu_custom_call.1} parent=1 // loop_header
      %s11 = sphi 0, %s15
      %p12 = scmp.ge.s32.totalorder %s11, 6
      %s18 = sphi 0, %s37
      %s19 = sphi 0, %s33
      %s20 = sphi 0, %s29
      %s21 = sphi 0, %s18
      %s22 = sphi 0, %s19
      %s23 = sphi 0, %s20
      %s24 = sphi 0, %s21
      %s25 = sphi 0, %s22
      %s26 = sphi 0, %s23
      %s42 = sphi 0, %s44
      %s45 = sphi 0, %s42
      %s46 = sphi 0, %s45
      %s62 = sphi 0, %s46
      %s70 = sphi 0, %s72
      %s73 = sphi 0, %s70
      %s74 = sphi 0, %s73
      %s90 = sphi 0, %s74
      %s98 = sphi 0, %s100
      %s101 = sphi 0, %s98
      %s102 = sphi 0, %s101
      %s118 = sphi 0, %s102
    $region4: #{tpu_custom_call.1} parent=1 // loop_header_branch
      %14 = sbr.rel (%p12) target = $region8
    $region5: #{tpu_custom_call.1} parent=1 // loop_body
      %s16 = ssub.s32 %s11, 1
      %s17 = ssub.s32 %s11, 2
      %s27 = sadd.s32 1, %s20
      %p28 = scmp.ge.s32.totalorder %s27, 1
      %s29 = scalar_select %p28, 0, %s27
      %s30 = sadd.s32 1, %s19
      %s31 = scalar_select %p28, %s30, %s19
      %p32 = scmp.ge.s32.totalorder %s31, 1
      %s33 = scalar_select %p32, 0, %s31
      %s34 = sadd.s32 1, %s18
      %s35 = scalar_select %p32, %s34, %s18
      %p36 = scmp.ge.s32.totalorder %s35, 4
      %s37 = scalar_select %p36, 0, %s35
      %s38 = ssub.s32 %s18, %s37
      %s39 = ssub.s32 %s20, %s29
      %s40 = sor.u32 %s38, %s39
      %p41 = scmp.eq.s32.totalorder %s40, 0
      %s43 = sadd.s32 %s42, 1
      %s44 = scalar_select %p41, %s42, %s43
      %p47 = pneg %p41
      %p48 = scmp.eq.s32.totalorder %s11, 3
      %p49 = por %p47, %p48
      %p50 = scmp.ne.s32.totalorder %s42, %s45
      %p51 = scmp.eq.s32.totalorder %s11, 0
      %p52 = por %p50, %p51
      %p53 = scmp.ne.s32.totalorder %s42, %s45
      %p54 = scmp.eq.s32.totalorder %s16, 3
      %p55 = por %p53, %p54
      %p56 = scmp.ne.s32.totalorder %s45, %s46
      %p57 = scmp.eq.s32.totalorder %s16, 0
      %p58 = por %p56, %p57
      %p59 = scmp.ne.s32.totalorder %s45, %s46
      %p60 = scmp.eq.s32.totalorder %s17, 3
      %p61 = por %p59, %p60
      %p63 = scmp.ne.s32.totalorder %s46, %s62
      %p64 = scmp.eq.s32.totalorder %s17, 0
      %p65 = por %p63, %p64
      %s66 = ssub.s32 %s20, %s29
      %s67 = ssub.s32 %s19, %s33
      %s68 = sor.u32 %s66, %s67
      %p69 = scmp.eq.s32.totalorder %s68, 0
      %s71 = sadd.s32 %s70, 1
      %s72 = scalar_select %p69, %s70, %s71
      %p75 = pneg %p69
      %p76 = scmp.eq.s32.totalorder %s11, 3
      %p77 = por %p75, %p76
      %p78 = scmp.ne.s32.totalorder %s70, %s73
      %p79 = scmp.eq.s32.totalorder %s11, 0
      %p80 = por %p78, %p79
      %p81 = scmp.ne.s32.totalorder %s70, %s73
      %p82 = scmp.eq.s32.totalorder %s16, 3
      %p83 = por %p81, %p82
      %p84 = scmp.ne.s32.totalorder %s73, %s74
      %p85 = scmp.eq.s32.totalorder %s16, 0
      %p86 = por %p84, %p85
      %p87 = scmp.ne.s32.totalorder %s73, %s74
      %p88 = scmp.eq.s32.totalorder %s17, 3
      %p89 = por %p87, %p88
      %p91 = scmp.ne.s32.totalorder %s74, %s90
      %p92 = scmp.eq.s32.totalorder %s17, 0
      %p93 = por %p91, %p92
      %s94 = ssub.s32 %s18, %s37
      %s95 = ssub.s32 %s19, %s33
      %s96 = sor.u32 %s94, %s95
      %p97 = scmp.eq.s32.totalorder %s96, 0
      %s99 = sadd.s32 %s98, 1
      %s100 = scalar_select %p97, %s98, %s99
      %p103 = pneg %p97
      %p104 = scmp.eq.s32.totalorder %s11, 3
      %p105 = por %p103, %p104
      %p106 = scmp.ne.s32.totalorder %s98, %s101
      %p107 = scmp.eq.s32.totalorder %s11, 0
      %p108 = por %p106, %p107
      %p109 = scmp.ne.s32.totalorder %s98, %s101
      %p110 = scmp.eq.s32.totalorder %s16, 3
      %p111 = por %p109, %p110
      %p112 = scmp.ne.s32.totalorder %s101, %s102
      %p113 = scmp.eq.s32.totalorder %s16, 0
      %p114 = por %p112, %p113
      %p115 = scmp.ne.s32.totalorder %s101, %s102
      %p116 = scmp.eq.s32.totalorder %s17, 3
      %p117 = por %p115, %p116
      %p119 = scmp.ne.s32.totalorder %s102, %s118
      %p120 = scmp.eq.s32.totalorder %s17, 0
      %p121 = por %p119, %p120
      %p122 = scmp.le.s32.totalorder 1, %s11
      %p123 = scmp.lt.s32.totalorder %s11, 5
      %p124 = pnand %p122, %p123
      %p125 = pneg %p124
      // Predicated region
      $region9: #{tpu_custom_call.1} parent=5 // pred_check
        _
      $region10: #{tpu_custom_call.1} parent=5 // pred_check_branch
        %127 = sbr.rel (%p124) target = $region12
      $region11: #{tpu_custom_call.1} parent=5 // pred_region
        %s128 = ssub.s32 %s11, 1
        // Predicated region
        $region13: #{tpu_custom_call.1} parent=11 // pred_check
          %p129 = pneg %p86
        $region14: #{tpu_custom_call.1} parent=11 // pred_check_branch
          %131 = sbr.rel (%p129) target = $region16
        $region15: #{tpu_custom_call.1} parent=11 // pred_region
          %s132 = smul.u32 19, %s23
          %p133 = scmp.lt.s32.totalorder %s132, 18
          %s134 = scalar_select %p133, %s132, 18
          %p135 = scmp.lt.s32.totalorder %s22, 0
          %s136 = scalar_select %p135, %s22, 0
          %s137 = sadd.s32 %s136, %s134
          %s138 = smul.addr %s137, 4
          %s139 = scalar_lea.vmem %s1, %s138
          %s140 = smul.u32 19, %s23
        $region16: #{tpu_custom_call.1} parent=11 // pred_fallthru
          _
      $region12: #{tpu_custom_call.1} parent=5 // pred_fallthru
        _
      %p141 = scmp.lt.s32.totalorder %s11, 4
      // Predicated region
      $region17: #{tpu_custom_call.1} parent=5 // pred_check
        %p142 = pneg %p141
      $region18: #{tpu_custom_call.1} parent=5 // pred_check_branch
        %144 = sbr.rel (%p142) target = $region20
      $region19: #{tpu_custom_call.1} parent=5 // pred_region
        // Predicated region
        $region21: #{tpu_custom_call.1} parent=19 // pred_check
          %p145 = pneg %p52
        $region22: #{tpu_custom_call.1} parent=19 // pred_check_branch
          %147 = sbr.rel (%p145) target = $region24
        $region23: #{tpu_custom_call.1} parent=19 // pred_region
          %s148 = smul.u32 64, %s18
          %s149 = smul.u32 2, %s20
          %p150 = scmp.lt.s32.totalorder %s148, 255
          %s151 = scalar_select %p150, %s148, 255
          %p152 = scmp.lt.s32.totalorder %s149, 1
          %s153 = scalar_select %p152, %s149, 1
          %s154 = smul.addr %s151, 2
          %s155 = sadd.s32 %s153, %s154
          %s156 = smul.addr %s155, 4
          %s157 = scalar_lea.vmem %s0, %s156
          %s158 = smul.u32 64, %s18
          %s159 = smul.u32 2, %s20
        $region24: #{tpu_custom_call.1} parent=19 // pred_fallthru
          _
      $region20: #{tpu_custom_call.1} parent=5 // pred_fallthru
        _
      %p160 = scmp.le.s32.totalorder 1, %s11
      %p161 = scmp.lt.s32.totalorder %s11, 5
      %p162 = pnand %p160, %p161
      %p163 = pneg %p162
      // Predicated region
      $region25: #{tpu_custom_call.1} parent=5 // pred_check
        _
      $region26: #{tpu_custom_call.1} parent=5 // pred_check_branch
        %165 = sbr.rel (%p162) target = $region28
      $region27: #{tpu_custom_call.1} parent=5 // pred_region
        %s166 = ssub.s32 %s11, 1
        %s167 = smul.u32 64, %s21
        %s168 = smul.u32 2, %s23
        %p169 = scmp.lt.s32.totalorder %s167, 255
        %s170 = scalar_select %p169, %s167, 255
        %p171 = scmp.lt.s32.totalorder %s168, 1
        %s172 = scalar_select %p171, %s168, 1
        %s173 = smul.addr %s170, 2
        %s174 = sadd.s32 %s172, %s173
        %s175 = smul.addr %s174, 4
        %s176 = scalar_lea.vmem %s0, %s175
        %p177 = pneg %p58
        %p178 = pneg %p55
        %s179 = smul.u32 19, %s23
        %p180 = scmp.lt.s32.totalorder %s179, 18
        %s181 = scalar_select %p180, %s179, 18
        %p182 = scmp.lt.s32.totalorder %s22, 0
        %s183 = scalar_select %p182, %s22, 0
        %s184 = sadd.s32 %s183, %s181
        %s185 = smul.addr %s184, 4
        %s186 = scalar_lea.vmem %s1, %s185
        %p187 = pneg %p86
        %p188 = pneg %p83
        %p189 = pneg %p114
        %p190 = pneg %p111
        %s191 = sand.u32 %s101, 1
        %s192 = scalar_lea.sflag [#allocation4], %s191
        %s193 = sand.u32 %s101, 1
        %s194 = smul.addr %s193, 256
        %s195 = scalar_lea.vmem [#allocation3], %s194
        %s196 = smul.u32 64, %s21
        %s197 = smul.u32 2, %s23
        %p198 = scmp.lt.s32.totalorder %s196, 255
        %s199 = scalar_select %p198, %s196, 255
        %p200 = scmp.lt.s32.totalorder %s197, 1
        %s201 = scalar_select %p200, %s197, 1
        %s202 = smul.addr %s199, 2
        %s203 = sadd.s32 %s201, %s202
        %s204 = smul.addr %s203, 4
        %s205 = scalar_lea.vmem %s0, %s204
        %s206 = smul.u32 64, %s21
        %s207 = smul.u32 2, %s23
        %s208 = smul.u32 19, %s23
        %p209 = scmp.lt.s32.totalorder %s208, 18
        %s210 = scalar_select %p209, %s208, 18
        %p211 = scmp.lt.s32.totalorder %s22, 0
        %s212 = scalar_select %p211, %s22, 0
        %s213 = sadd.s32 %s212, %s210
        %s214 = smul.addr %s213, 4
        %s215 = scalar_lea.vmem %s1, %s214
        %s216 = smul.u32 19, %s23
        %s217 = smul.u32 64, %s21
        %p219 = scmp.eq.s32.totalorder %s23, 0
        // Predicated region
        $region29: #{tpu_custom_call.1} parent=27 // pred_check
          %p220 = pneg %p219
        $region30: #{tpu_custom_call.1} parent=27 // pred_check_branch
          %222 = sbr.rel (%p220) target = $region32
        $region31: #{tpu_custom_call.1} parent=27 // pred_region
          %223 = vst [vmem:[#allocation2] sm:$0xff] 0.0
          %224 = vst [vmem:[#allocation2 + $0x8] sm:$0xff] 0.0
          %225 = vst [vmem:[#allocation2 + $0x10] sm:$0xff] 0.0
          %226 = vst [vmem:[#allocation2 + $0x18] sm:$0xff] 0.0
          %227 = vst [vmem:[#allocation2 + $0x20] sm:$0xff] 0.0
          %228 = vst [vmem:[#allocation2 + $0x28] sm:$0xff] 0.0
          %229 = vst [vmem:[#allocation2 + $0x30] sm:$0xff] 0.0
          %230 = vst [vmem:[#allocation2 + $0x38] sm:$0xff] 0.0
          %231 = vst [vmem:[#allocation2 + $0x40] sm:$0xff] 0.0
          %232 = vst [vmem:[#allocation2 + $0x48] sm:$0xff] 0.0
          %233 = vst [vmem:[#allocation2 + $0x50] sm:$0xff] 0.0
          %234 = vst [vmem:[#allocation2 + $0x58] sm:$0xff] 0.0
          %235 = vst [vmem:[#allocation2 + $0x60] sm:$0xff] 0.0
          %236 = vst [vmem:[#allocation2 + $0x68] sm:$0xff] 0.0
          %237 = vst [vmem:[#allocation2 + $0x70] sm:$0xff] 0.0
          %238 = vst [vmem:[#allocation2 + $0x78] sm:$0xff] 0.0
          %239 = vst [vmem:[#allocation2 + $0x80] sm:$0xff] 0.0
          %240 = vst [vmem:[#allocation2 + $0x88] sm:$0xff] 0.0
          %241 = vst [vmem:[#allocation2 + $0x90] sm:$0xff] 0.0
          %242 = vst [vmem:[#allocation2 + $0x98] sm:$0xff] 0.0
          %243 = vst [vmem:[#allocation2 + $0xa0] sm:$0xff] 0.0
          %244 = vst [vmem:[#allocation2 + $0xa8] sm:$0xff] 0.0
          %245 = vst [vmem:[#allocation2 + $0xb0] sm:$0xff] 0.0
          %246 = vst [vmem:[#allocation2 + $0xb8] sm:$0xff] 0.0
          %247 = vst [vmem:[#allocation2 + $0xc0] sm:$0xff] 0.0
          %248 = vst [vmem:[#allocation2 + $0xc8] sm:$0xff] 0.0
          %249 = vst [vmem:[#allocation2 + $0xd0] sm:$0xff] 0.0
          %250 = vst [vmem:[#allocation2 + $0xd8] sm:$0xff] 0.0
          %251 = vst [vmem:[#allocation2 + $0xe0] sm:$0xff] 0.0
          %252 = vst [vmem:[#allocation2 + $0xe8] sm:$0xff] 0.0
          %253 = vst [vmem:[#allocation2 + $0xf0] sm:$0xff] 0.0
          %254 = vst [vmem:[#allocation2 + $0xf8] sm:$0xff] 0.0
          %255 = vst [vmem:[#allocation2 + $0x100] sm:$0xff] 0.0
          %256 = vst [vmem:[#allocation2 + $0x108] sm:$0xff] 0.0
          %257 = vst [vmem:[#allocation2 + $0x110] sm:$0xff] 0.0
          %258 = vst [vmem:[#allocation2 + $0x118] sm:$0xff] 0.0
          %259 = vst [vmem:[#allocation2 + $0x120] sm:$0xff] 0.0
          %260 = vst [vmem:[#allocation2 + $0x128] sm:$0xff] 0.0
          %261 = vst [vmem:[#allocation2 + $0x130] sm:$0xff] 0.0
          %262 = vst [vmem:[#allocation2 + $0x138] sm:$0xff] 0.0
          %263 = vst [vmem:[#allocation2 + $0x140] sm:$0xff] 0.0
          %264 = vst [vmem:[#allocation2 + $0x148] sm:$0xff] 0.0
          %265 = vst [vmem:[#allocation2 + $0x150] sm:$0xff] 0.0
          %266 = vst [vmem:[#allocation2 + $0x158] sm:$0xff] 0.0
          %267 = vst [vmem:[#allocation2 + $0x160] sm:$0xff] 0.0
          %268 = vst [vmem:[#allocation2 + $0x168] sm:$0xff] 0.0
          %269 = vst [vmem:[#allocation2 + $0x170] sm:$0xff] 0.0
          %270 = vst [vmem:[#allocation2 + $0x178] sm:$0xff] 0.0
          %271 = vst [vmem:[#allocation2 + $0x180] sm:$0xff] 0.0
          %272 = vst [vmem:[#allocation2 + $0x188] sm:$0xff] 0.0
          %273 = vst [vmem:[#allocation2 + $0x190] sm:$0xff] 0.0
          %274 = vst [vmem:[#allocation2 + $0x198] sm:$0xff] 0.0
          %275 = vst [vmem:[#allocation2 + $0x1a0] sm:$0xff] 0.0
          %276 = vst [vmem:[#allocation2 + $0x1a8] sm:$0xff] 0.0
          %277 = vst [vmem:[#allocation2 + $0x1b0] sm:$0xff] 0.0
          %278 = vst [vmem:[#allocation2 + $0x1b8] sm:$0xff] 0.0
          %279 = vst [vmem:[#allocation2 + $0x1c0] sm:$0xff] 0.0
          %280 = vst [vmem:[#allocation2 + $0x1c8] sm:$0xff] 0.0
          %281 = vst [vmem:[#allocation2 + $0x1d0] sm:$0xff] 0.0
          %282 = vst [vmem:[#allocation2 + $0x1d8] sm:$0xff] 0.0
          %283 = vst [vmem:[#allocation2 + $0x1e0] sm:$0xff] 0.0
          %284 = vst [vmem:[#allocation2 + $0x1e8] sm:$0xff] 0.0
          %285 = vst [vmem:[#allocation2 + $0x1f0] sm:$0xff] 0.0
          %286 = vst [vmem:[#allocation2 + $0x1f8] sm:$0xff] 0.0
        $region32: #{tpu_custom_call.1} parent=27 // pred_fallthru
          _
        %v287 = vld [vmem:[#allocation2] sm:$0xff]
        %v288 = vld [vmem:[#allocation2 + $0x8] sm:$0xff]
        %v289 = vld [vmem:[#allocation2 + $0x10] sm:$0xff]
        %v290 = vld [vmem:[#allocation2 + $0x18] sm:$0xff]
        %v291 = vld [vmem:[#allocation2 + $0x20] sm:$0xff]
        %v292 = vld [vmem:[#allocation2 + $0x28] sm:$0xff]
        %v293 = vld [vmem:[#allocation2 + $0x30] sm:$0xff]
        %v294 = vld [vmem:[#allocation2 + $0x38] sm:$0xff]
        %v295 = vld [vmem:[#allocation2 + $0x40] sm:$0xff]
        %v296 = vld [vmem:[#allocation2 + $0x48] sm:$0xff]
        %v297 = vld [vmem:[#allocation2 + $0x50] sm:$0xff]
        %v298 = vld [vmem:[#allocation2 + $0x58] sm:$0xff]
        %v299 = vld [vmem:[#allocation2 + $0x60] sm:$0xff]
        %v300 = vld [vmem:[#allocation2 + $0x68] sm:$0xff]
        %v301 = vld [vmem:[#allocation2 + $0x70] sm:$0xff]
        %v302 = vld [vmem:[#allocation2 + $0x78] sm:$0xff]
        %v303 = vld [vmem:[#allocation2 + $0x80] sm:$0xff]
        %v304 = vld [vmem:[#allocation2 + $0x88] sm:$0xff]
        %v305 = vld [vmem:[#allocation2 + $0x90] sm:$0xff]
        %v306 = vld [vmem:[#allocation2 + $0x98] sm:$0xff]
        %v307 = vld [vmem:[#allocation2 + $0xa0] sm:$0xff]
        %v308 = vld [vmem:[#allocation2 + $0xa8] sm:$0xff]
        %v309 = vld [vmem:[#allocation2 + $0xb0] sm:$0xff]
        %v310 = vld [vmem:[#allocation2 + $0xb8] sm:$0xff]
        %v311 = vld [vmem:[#allocation2 + $0xc0] sm:$0xff]
        %v312 = vld [vmem:[#allocation2 + $0xc8] sm:$0xff]
        %v313 = vld [vmem:[#allocation2 + $0xd0] sm:$0xff]
        %v314 = vld [vmem:[#allocation2 + $0xd8] sm:$0xff]
        %v315 = vld [vmem:[#allocation2 + $0xe0] sm:$0xff]
        %v316 = vld [vmem:[#allocation2 + $0xe8] sm:$0xff]
        %v317 = vld [vmem:[#allocation2 + $0xf0] sm:$0xff]
        %v318 = vld [vmem:[#allocation2 + $0xf8] sm:$0xff]
        %v319 = vld [vmem:[#allocation2 + $0x100] sm:$0xff]
        %v320 = vld [vmem:[#allocation2 + $0x108] sm:$0xff]
        %v321 = vld [vmem:[#allocation2 + $0x110] sm:$0xff]
        %v322 = vld [vmem:[#allocation2 + $0x118] sm:$0xff]
        %v323 = vld [vmem:[#allocation2 + $0x120] sm:$0xff]
        %v324 = vld [vmem:[#allocation2 + $0x128] sm:$0xff]
        %v325 = vld [vmem:[#allocation2 + $0x130] sm:$0xff]
        %v326 = vld [vmem:[#allocation2 + $0x138] sm:$0xff]
        %v327 = vld [vmem:[#allocation2 + $0x140] sm:$0xff]
        %v328 = vld [vmem:[#allocation2 + $0x148] sm:$0xff]
        %v329 = vld [vmem:[#allocation2 + $0x150] sm:$0xff]
        %v330 = vld [vmem:[#allocation2 + $0x158] sm:$0xff]
        %v331 = vld [vmem:[#allocation2 + $0x160] sm:$0xff]
        %v332 = vld [vmem:[#allocation2 + $0x168] sm:$0xff]
        %v333 = vld [vmem:[#allocation2 + $0x170] sm:$0xff]
        %v334 = vld [vmem:[#allocation2 + $0x178] sm:$0xff]
        %v335 = vld [vmem:[#allocation2 + $0x180] sm:$0xff]
        %v336 = vld [vmem:[#allocation2 + $0x188] sm:$0xff]
        %v337 = vld [vmem:[#allocation2 + $0x190] sm:$0xff]
        %v338 = vld [vmem:[#allocation2 + $0x198] sm:$0xff]
        %v339 = vld [vmem:[#allocation2 + $0x1a0] sm:$0xff]
        %v340 = vld [vmem:[#allocation2 + $0x1a8] sm:$0xff]
        %v341 = vld [vmem:[#allocation2 + $0x1b0] sm:$0xff]
        %v342 = vld [vmem:[#allocation2 + $0x1b8] sm:$0xff]
        %v343 = vld [vmem:[#allocation2 + $0x1c0] sm:$0xff]
        %v344 = vld [vmem:[#allocation2 + $0x1c8] sm:$0xff]
        %v345 = vld [vmem:[#allocation2 + $0x1d0] sm:$0xff]
        %v346 = vld [vmem:[#allocation2 + $0x1d8] sm:$0xff]
        %v347 = vld [vmem:[#allocation2 + $0x1e0] sm:$0xff]
        %v348 = vld [vmem:[#allocation2 + $0x1e8] sm:$0xff]
        %v349 = vld [vmem:[#allocation2 + $0x1f0] sm:$0xff]
        %v350 = vld [vmem:[#allocation2 + $0x1f8] sm:$0xff]
        %v351 = vld [vmem:[%s205] sm:$0xff]
        %v352 = vld [vmem:[%s205 + $0x8] sm:$0xff]
        %v353 = vld [vmem:[%s205 + $0x10] sm:$0xff]
        %v354 = vld [vmem:[%s205 + $0x18] sm:$0xff]
        %v355 = vld [vmem:[%s205 + $0x20] sm:$0xff]
        %v356 = vld [vmem:[%s205 + $0x28] sm:$0xff]
        %v357 = vld [vmem:[%s205 + $0x30] sm:$0xff]
        %v358 = vld [vmem:[%s205 + $0x38] sm:$0xff]
        %v359 = vld [vmem:[%s205 + $0x40] sm:$0xff]
        %v360 = vld [vmem:[%s205 + $0x48] sm:$0xff]
        %v361 = vld [vmem:[%s205 + $0x50] sm:$0xff]
        %v362 = vld [vmem:[%s205 + $0x58] sm:$0xff]
        %v363 = vld [vmem:[%s205 + $0x60] sm:$0xff]
        %v364 = vld [vmem:[%s205 + $0x68] sm:$0xff]
        %v365 = vld [vmem:[%s205 + $0x70] sm:$0xff]
        %v366 = vld [vmem:[%s205 + $0x78] sm:$0xff]
        %v367 = vld [vmem:[%s205 + $0x80] sm:$0xff]
        %v368 = vld [vmem:[%s205 + $0x88] sm:$0xff]
        %v369 = vld [vmem:[%s205 + $0x90] sm:$0xff]
        %v370 = vld [vmem:[%s205 + $0x98] sm:$0xff]
        %v371 = vld [vmem:[%s205 + $0xa0] sm:$0xff]
        %v372 = vld [vmem:[%s205 + $0xa8] sm:$0xff]
        %v373 = vld [vmem:[%s205 + $0xb0] sm:$0xff]
        %v374 = vld [vmem:[%s205 + $0xb8] sm:$0xff]
        %v375 = vld [vmem:[%s205 + $0xc0] sm:$0xff]
        %v376 = vld [vmem:[%s205 + $0xc8] sm:$0xff]
        %v377 = vld [vmem:[%s205 + $0xd0] sm:$0xff]
        %v378 = vld [vmem:[%s205 + $0xd8] sm:$0xff]
        %v379 = vld [vmem:[%s205 + $0xe0] sm:$0xff]
        %v380 = vld [vmem:[%s205 + $0xe8] sm:$0xff]
        %v381 = vld [vmem:[%s205 + $0xf0] sm:$0xff]
        %v382 = vld [vmem:[%s205 + $0xf8] sm:$0xff]
        %v383 = vld [vmem:[%s205 + $0x100] sm:$0xff]
        %v384 = vld [vmem:[%s205 + $0x108] sm:$0xff]
        %v385 = vld [vmem:[%s205 + $0x110] sm:$0xff]
        %v386 = vld [vmem:[%s205 + $0x118] sm:$0xff]
        %v387 = vld [vmem:[%s205 + $0x120] sm:$0xff]
        %v388 = vld [vmem:[%s205 + $0x128] sm:$0xff]
        %v389 = vld [vmem:[%s205 + $0x130] sm:$0xff]
        %v390 = vld [vmem:[%s205 + $0x138] sm:$0xff]
        %v391 = vld [vmem:[%s205 + $0x140] sm:$0xff]
        %v392 = vld [vmem:[%s205 + $0x148] sm:$0xff]
        %v393 = vld [vmem:[%s205 + $0x150] sm:$0xff]
        %v394 = vld [vmem:[%s205 + $0x158] sm:$0xff]
        %v395 = vld [vmem:[%s205 + $0x160] sm:$0xff]
        %v396 = vld [vmem:[%s205 + $0x168] sm:$0xff]
        %v397 = vld [vmem:[%s205 + $0x170] sm:$0xff]
        %v398 = vld [vmem:[%s205 + $0x178] sm:$0xff]
        %v399 = vld [vmem:[%s205 + $0x180] sm:$0xff]
        %v400 = vld [vmem:[%s205 + $0x188] sm:$0xff]
        %v401 = vld [vmem:[%s205 + $0x190] sm:$0xff]
        %v402 = vld [vmem:[%s205 + $0x198] sm:$0xff]
        %v403 = vld [vmem:[%s205 + $0x1a0] sm:$0xff]
        %v404 = vld [vmem:[%s205 + $0x1a8] sm:$0xff]
        %v405 = vld [vmem:[%s205 + $0x1b0] sm:$0xff]
        %v406 = vld [vmem:[%s205 + $0x1b8] sm:$0xff]
        %v407 = vld [vmem:[%s205 + $0x1c0] sm:$0xff]
        %v408 = vld [vmem:[%s205 + $0x1c8] sm:$0xff]
        %v409 = vld [vmem:[%s205 + $0x1d0] sm:$0xff]
        %v410 = vld [vmem:[%s205 + $0x1d8] sm:$0xff]
        %v411 = vld [vmem:[%s205 + $0x1e0] sm:$0xff]
        %v412 = vld [vmem:[%s205 + $0x1e8] sm:$0xff]
        %v413 = vld [vmem:[%s205 + $0x1f0] sm:$0xff]
        %v414 = vld [vmem:[%s205 + $0x1f8] sm:$0xff]
        %v415 = vld [vmem:[%s215] sm:$0xf]
        %v416 = vld [vmem:[%s215 + $0x4] sm:$0xf]
        %v417 = vld [vmem:[%s215 + $0x8] sm:$0xf]
        %v418 = vld [vmem:[%s215 + $0xc] sm:$0xf]
        %v419 = vld [vmem:[%s215 + $0x10] sm:$0xf]
        %v420 = vld [vmem:[%s215 + $0x14] sm:$0xf]
        %v421 = vld [vmem:[%s215 + $0x18] sm:$0xf]
        %v422 = vld [vmem:[%s215 + $0x1c] sm:$0xf]
        %v423 = vld [vmem:[%s215 + $0x20] sm:$0xf]
        %v424 = vld [vmem:[%s215 + $0x24] sm:$0xf]
        %v425 = vld [vmem:[%s215 + $0x28] sm:$0xf]
        %v426 = vld [vmem:[%s215 + $0x2c] sm:$0xf]
        %v427 = vld [vmem:[%s215 + $0x30] sm:$0xf]
        %v428 = vld [vmem:[%s215 + $0x34] sm:$0xf]
        %v429 = vld [vmem:[%s215 + $0x38] sm:$0xf]
        %v430 = vld [vmem:[%s215 + $0x3c] sm:$0xf]
        %v431 = vld [vmem:[%s215 + $0x40] sm:$0xf]
        %v432 = vld [vmem:[%s215 + $0x44] sm:$0xf]
        %v433 = vld [vmem:[%s215 + $0x48] sm:$0x3]
        %v498 = vunpack.c.l.b16 %v351
        %v499 = vunpack.c.h.b16 %v351
        %v500 = vunpack.c.l.b16 %v352
        %v501 = vunpack.c.h.b16 %v352
        %v502 = vunpack.c.l.b16 %v353
        %v503 = vunpack.c.h.b16 %v353
        %v504 = vunpack.c.l.b16 %v354
        %v505 = vunpack.c.h.b16 %v354
        %v506 = vunpack.c.l.b16 %v355
        %v507 = vunpack.c.h.b16 %v355
        %v508 = vunpack.c.l.b16 %v356
        %v509 = vunpack.c.h.b16 %v356
        %v510 = vunpack.c.l.b16 %v357
        %v511 = vunpack.c.h.b16 %v357
        %v512 = vunpack.c.l.b16 %v358
        %v513 = vunpack.c.h.b16 %v358
        %v514 = vunpack.c.l.b16 %v359
        %v515 = vunpack.c.h.b16 %v359
        %v516 = vunpack.c.l.b16 %v360
        %v517 = vunpack.c.h.b16 %v360
        %v518 = vunpack.c.l.b16 %v361
        %v519 = vunpack.c.h.b16 %v361
        %v520 = vunpack.c.l.b16 %v362
        %v521 = vunpack.c.h.b16 %v362
        %v522 = vunpack.c.l.b16 %v363
        %v523 = vunpack.c.h.b16 %v363
        %v524 = vunpack.c.l.b16 %v364
        %v525 = vunpack.c.h.b16 %v364
        %v526 = vunpack.c.l.b16 %v365
        %v527 = vunpack.c.h.b16 %v365
        %v528 = vunpack.c.l.b16 %v366
        %v529 = vunpack.c.h.b16 %v366
        %v530 = vunpack.c.l.b16 %v367
        %v531 = vunpack.c.h.b16 %v367
        %v532 = vunpack.c.l.b16 %v368
        %v533 = vunpack.c.h.b16 %v368
        %v534 = vunpack.c.l.b16 %v369
        %v535 = vunpack.c.h.b16 %v369
        %v536 = vunpack.c.l.b16 %v370
        %v537 = vunpack.c.h.b16 %v370
        %v538 = vunpack.c.l.b16 %v371
        %v539 = vunpack.c.h.b16 %v371
        %v540 = vunpack.c.l.b16 %v372
        %v541 = vunpack.c.h.b16 %v372
        %v542 = vunpack.c.l.b16 %v373
        %v543 = vunpack.c.h.b16 %v373
        %v544 = vunpack.c.l.b16 %v374
        %v545 = vunpack.c.h.b16 %v374
        %v546 = vunpack.c.l.b16 %v375
        %v547 = vunpack.c.h.b16 %v375
        %v548 = vunpack.c.l.b16 %v376
        %v549 = vunpack.c.h.b16 %v376
        %v550 = vunpack.c.l.b16 %v377
        %v551 = vunpack.c.h.b16 %v377
        %v552 = vunpack.c.l.b16 %v378
        %v553 = vunpack.c.h.b16 %v378
        %v554 = vunpack.c.l.b16 %v379
        %v555 = vunpack.c.h.b16 %v379
        %v556 = vunpack.c.l.b16 %v380
        %v557 = vunpack.c.h.b16 %v380
        %v558 = vunpack.c.l.b16 %v381
        %v559 = vunpack.c.h.b16 %v381
        %v560 = vunpack.c.l.b16 %v382
        %v561 = vunpack.c.h.b16 %v382
        %v562 = vunpack.c.l.b16 %v383
        %v563 = vunpack.c.h.b16 %v383
        %v564 = vunpack.c.l.b16 %v384
        %v565 = vunpack.c.h.b16 %v384
        %v566 = vunpack.c.l.b16 %v385
        %v567 = vunpack.c.h.b16 %v385
        %v568 = vunpack.c.l.b16 %v386
        %v569 = vunpack.c.h.b16 %v386
        %v570 = vunpack.c.l.b16 %v387
        %v571 = vunpack.c.h.b16 %v387
        %v572 = vunpack.c.l.b16 %v388
        %v573 = vunpack.c.h.b16 %v388
        %v574 = vunpack.c.l.b16 %v389
        %v575 = vunpack.c.h.b16 %v389
        %v576 = vunpack.c.l.b16 %v390
        %v577 = vunpack.c.h.b16 %v390
        %v578 = vunpack.c.l.b16 %v391
        %v579 = vunpack.c.h.b16 %v391
        %v580 = vunpack.c.l.b16 %v392
        %v581 = vunpack.c.h.b16 %v392
        %v582 = vunpack.c.l.b16 %v393
        %v583 = vunpack.c.h.b16 %v393
        %v584 = vunpack.c.l.b16 %v394
        %v585 = vunpack.c.h.b16 %v394
        %v586 = vunpack.c.l.b16 %v395
        %v587 = vunpack.c.h.b16 %v395
        %v588 = vunpack.c.l.b16 %v396
        %v589 = vunpack.c.h.b16 %v396
        %v590 = vunpack.c.l.b16 %v397
        %v591 = vunpack.c.h.b16 %v397
        %v592 = vunpack.c.l.b16 %v398
        %v593 = vunpack.c.h.b16 %v398
        %v594 = vunpack.c.l.b16 %v399
        %v595 = vunpack.c.h.b16 %v399
        %v596 = vunpack.c.l.b16 %v400
        %v597 = vunpack.c.h.b16 %v400
        %v598 = vunpack.c.l.b16 %v401
        %v599 = vunpack.c.h.b16 %v401
        %v600 = vunpack.c.l.b16 %v402
        %v601 = vunpack.c.h.b16 %v402
        %v602 = vunpack.c.l.b16 %v403
        %v603 = vunpack.c.h.b16 %v403
        %v604 = vunpack.c.l.b16 %v404
        %v605 = vunpack.c.h.b16 %v404
        %v606 = vunpack.c.l.b16 %v405
        %v607 = vunpack.c.h.b16 %v405
        %v608 = vunpack.c.l.b16 %v406
        %v609 = vunpack.c.h.b16 %v406
        %v610 = vunpack.c.l.b16 %v407
        %v611 = vunpack.c.h.b16 %v407
        %v612 = vunpack.c.l.b16 %v408
        %v613 = vunpack.c.h.b16 %v408
        %v614 = vunpack.c.l.b16 %v409
        %v615 = vunpack.c.h.b16 %v409
        %v616 = vunpack.c.l.b16 %v410
        %v617 = vunpack.c.h.b16 %v410
        %v618 = vunpack.c.l.b16 %v411
        %v619 = vunpack.c.h.b16 %v411
        %v620 = vunpack.c.l.b16 %v412
        %v621 = vunpack.c.h.b16 %v412
        %v622 = vunpack.c.l.b16 %v413
        %v623 = vunpack.c.h.b16 %v413
        %v624 = vunpack.c.l.b16 %v414
        %v625 = vunpack.c.h.b16 %v414
        %v626 = vpack.c.b16 %v500, %v498
        %v627 = vpack.c.b16 %v501, %v499
        %v628 = vpack.c.b16 %v504, %v502
        %v629 = vpack.c.b16 %v505, %v503
        %v630 = vpack.c.b16 %v508, %v506
        %v631 = vpack.c.b16 %v509, %v507
        %v632 = vpack.c.b16 %v512, %v510
        %v633 = vpack.c.b16 %v513, %v511
        %v634 = vpack.c.b16 %v516, %v514
        %v635 = vpack.c.b16 %v517, %v515
        %v636 = vpack.c.b16 %v520, %v518
        %v637 = vpack.c.b16 %v521, %v519
        %v638 = vpack.c.b16 %v524, %v522
        %v639 = vpack.c.b16 %v525, %v523
        %v640 = vpack.c.b16 %v528, %v526
        %v641 = vpack.c.b16 %v529, %v527
        %v642 = vpack.c.b16 %v532, %v530
        %v643 = vpack.c.b16 %v533, %v531
        %v644 = vpack.c.b16 %v536, %v534
        %v645 = vpack.c.b16 %v537, %v535
        %v646 = vpack.c.b16 %v540, %v538
        %v647 = vpack.c.b16 %v541, %v539
        %v648 = vpack.c.b16 %v544, %v542
        %v649 = vpack.c.b16 %v545, %v543
        %v650 = vpack.c.b16 %v548, %v546
        %v651 = vpack.c.b16 %v549, %v547
        %v652 = vpack.c.b16 %v552, %v550
        %v653 = vpack.c.b16 %v553, %v551
        %v654 = vpack.c.b16 %v556, %v554
        %v655 = vpack.c.b16 %v557, %v555
        %v656 = vpack.c.b16 %v560, %v558
        %v657 = vpack.c.b16 %v561, %v559
        %v658 = vpack.c.b16 %v564, %v562
        %v659 = vpack.c.b16 %v565, %v563
        %v660 = vpack.c.b16 %v568, %v566
        %v661 = vpack.c.b16 %v569, %v567
        %v662 = vpack.c.b16 %v572, %v570
        %v663 = vpack.c.b16 %v573, %v571
        %v664 = vpack.c.b16 %v576, %v574
        %v665 = vpack.c.b16 %v577, %v575
        %v666 = vpack.c.b16 %v580, %v578
        %v667 = vpack.c.b16 %v581, %v579
        %v668 = vpack.c.b16 %v584, %v582
        %v669 = vpack.c.b16 %v585, %v583
        %v670 = vpack.c.b16 %v588, %v586
        %v671 = vpack.c.b16 %v589, %v587
        %v672 = vpack.c.b16 %v592, %v590
        %v673 = vpack.c.b16 %v593, %v591
        %v674 = vpack.c.b16 %v596, %v594
        %v675 = vpack.c.b16 %v597, %v595
        %v676 = vpack.c.b16 %v600, %v598
        %v677 = vpack.c.b16 %v601, %v599
        %v678 = vpack.c.b16 %v604, %v602
        %v679 = vpack.c.b16 %v605, %v603
        %v680 = vpack.c.b16 %v608, %v606
        %v681 = vpack.c.b16 %v609, %v607
        %v682 = vpack.c.b16 %v612, %v610
        %v683 = vpack.c.b16 %v613, %v611
        %v684 = vpack.c.b16 %v616, %v614
        %v685 = vpack.c.b16 %v617, %v615
        %v686 = vpack.c.b16 %v620, %v618
        %v687 = vpack.c.b16 %v621, %v619
        %v688 = vpack.c.b16 %v624, %v622
        %v689 = vpack.c.b16 %v625, %v623
        %v741 = vunpack.c.l.b16 %v415
        %v742 = vunpack.c.l.b16 %v416
        %v743 = vunpack.c.l.b16 %v417
        %v744 = vunpack.c.l.b16 %v418
        %v745 = vunpack.c.l.b16 %v419
        %v746 = vunpack.c.l.b16 %v420
        %v747 = vunpack.c.l.b16 %v421
        %v748 = vunpack.c.l.b16 %v422
        %v749 = vunpack.c.l.b16 %v423
        %v750 = vunpack.c.l.b16 %v424
        %v751 = vunpack.c.l.b16 %v425
        %v752 = vunpack.c.l.b16 %v426
        %v753 = vunpack.c.l.b16 %v427
        %v754 = vunpack.c.l.b16 %v428
        %v755 = vunpack.c.l.b16 %v429
        %v756 = vunpack.c.l.b16 %v430
        %v757 = vunpack.c.l.b16 %v431
        %v758 = vunpack.c.l.b16 %v432
        %v759 = vunpack.c.l.b16 %v433
        %v760 = vpack.c.b16 %v742, %v741
        %v761 = vpack.c.b16 %v744, %v743
        %v762 = vpack.c.b16 %v746, %v745
        %v763 = vpack.c.b16 %v748, %v747
        %v764 = vpack.c.b16 %v750, %v749
        %v765 = vpack.c.b16 %v752, %v751
        %v766 = vpack.c.b16 %v754, %v753
        %v767 = vpack.c.b16 %v756, %v755
        %v768 = vpack.c.b16 %v758, %v757
        %v769 = vpack.c.b16 %v759, %v759
        %vm779 = vcmask 154624
        %v781 = vsel %vm779, %v627, 0
        %v784 = vsel %vm779, %v629, 0
        %v787 = vsel %vm779, %v631, 0
        %v790 = vsel %vm779, %v633, 0
        %v793 = vsel %vm779, %v635, 0
        %v796 = vsel %vm779, %v637, 0
        %v799 = vsel %vm779, %v639, 0
        %v802 = vsel %vm779, %v641, 0
        %v805 = vsel %vm779, %v643, 0
        %v808 = vsel %vm779, %v645, 0
        %v811 = vsel %vm779, %v647, 0
        %v814 = vsel %vm779, %v649, 0
        %v817 = vsel %vm779, %v651, 0
        %v820 = vsel %vm779, %v653, 0
        %v823 = vsel %vm779, %v655, 0
        %v826 = vsel %vm779, %v657, 0
        %v829 = vsel %vm779, %v659, 0
        %v832 = vsel %vm779, %v661, 0
        %v835 = vsel %vm779, %v663, 0
        %v838 = vsel %vm779, %v665, 0
        %v841 = vsel %vm779, %v667, 0
        %v844 = vsel %vm779, %v669, 0
        %v847 = vsel %vm779, %v671, 0
        %v850 = vsel %vm779, %v673, 0
        %v853 = vsel %vm779, %v675, 0
        %v856 = vsel %vm779, %v677, 0
        %v859 = vsel %vm779, %v679, 0
        %v862 = vsel %vm779, %v681, 0
        %v865 = vsel %vm779, %v683, 0
        %v868 = vsel %vm779, %v685, 0
        %v871 = vsel %vm779, %v687, 0
        %v874 = vsel %vm779, %v689, 0
        %vm876 = vcmask 1040384
        %vm877 = vcmask 1041408
        %v878 = vsel %vm876, 4294967295, 65535
        %v879 = vsel %vm877, %v878, 0
        %v881 = vand.u32 %v769, %v879
        %883 = vmatprep.subr.bf16.mxu0 0
        %884 = vmatpush1.bf16.msra.mxu0 %v760
        %885 = vmatprep.subr.bf16.mxu0 0
        %886 = vmatpush1.bf16.msra.mxu0 %v761
        %887 = vmatprep.subr.bf16.mxu0 0
        %888 = vmatpush1.bf16.msra.mxu0 %v762
        %889 = vmatprep.subr.bf16.mxu0 0
        %890 = vmatpush1.bf16.msra.mxu0 %v763
        %891 = vmatprep.subr.bf16.mxu0 0
        %892 = vmatpush1.bf16.msra.mxu0 %v764
        %893 = vmatprep.subr.bf16.mxu0 0
        %894 = vmatpush1.bf16.msra.mxu0 %v765
        %895 = vmatprep.subr.bf16.mxu0 0
        %896 = vmatpush1.bf16.msra.mxu0 %v766
        %897 = vmatprep.subr.bf16.mxu0 0
        %898 = vmatpush1.bf16.msra.mxu0 %v767
        %899 = vmatprep.subr.bf16.mxu0 0
        %900 = vmatpush1.bf16.msra.mxu0 %v768
        %901 = vmatprep.subr.bf16.mxu0 0
        %902 = vmatpush1.bf16.msra.mxu0 %v881
        %903 = vmatprep.subr.bf16.mxu0 0
        %904 = vmatpush1.bf16.msra.mxu0 0
        %905 = vmatprep.subr.bf16.mxu0 0
        %906 = vmatpush1.bf16.msra.mxu0 0
        %907 = vmatprep.subr.bf16.mxu0 0
        %908 = vmatpush1.bf16.msra.mxu0 0
        %909 = vmatprep.subr.bf16.mxu0 0
        %910 = vmatpush1.bf16.msra.mxu0 0
        %911 = vmatprep.subr.bf16.mxu0 0
        %912 = vmatpush1.bf16.msra.mxu0 0
        %913 = vmatprep.subr.bf16.mxu0 0
        %914 = vmatpush1.bf16.msra.mxu0 0
        %915 = vmatprep.mubr.bf16.mxu0 %v781
        %916 = vmatmul.mubr.bf16.gmra.mrb[0].mxu0 %v626
        %v917 = vpop.f32.mrb[0].mxu0
        %v918 = vadd.f32 0.0, %v917
        %v919 = vpop.f32.mrb[0].mxu0
        %v920 = vpop.f32.mrb[0].mxu0
        %v921 = vadd.f32 0.0, %v920
        %v922 = vpop.f32.mrb[0].mxu0
        %923 = vmatprep.mubr.bf16.mxu0 %v784
        %924 = vmatmul.mubr.bf16.gmra.mrb[0].mxu0 %v628
        %v925 = vpop.f32.mrb[0].mxu0
        %v926 = vadd.f32 0.0, %v925
        %v927 = vpop.f32.mrb[0].mxu0
        %v928 = vpop.f32.mrb[0].mxu0
        %v929 = vadd.f32 0.0, %v928
        %v930 = vpop.f32.mrb[0].mxu0
        %931 = vmatprep.mubr.bf16.mxu0 %v787
        %932 = vmatmul.mubr.bf16.gmra.mrb[0].mxu0 %v630
        %v933 = vpop.f32.mrb[0].mxu0
        %v934 = vadd.f32 0.0, %v933
        %v935 = vpop.f32.mrb[0].mxu0
        %v936 = vpop.f32.mrb[0].mxu0
        %v937 = vadd.f32 0.0, %v936
        %v938 = vpop.f32.mrb[0].mxu0
        %939 = vmatprep.mubr.bf16.mxu0 %v790
        %940 = vmatmul.mubr.bf16.gmra.mrb[0].mxu0 %v632
        %v941 = vpop.f32.mrb[0].mxu0
        %v942 = vadd.f32 0.0, %v941
        %v943 = vpop.f32.mrb[0].mxu0
        %v944 = vpop.f32.mrb[0].mxu0
        %v945 = vadd.f32 0.0, %v944
        %v946 = vpop.f32.mrb[0].mxu0
        %947 = vmatprep.mubr.bf16.mxu0 %v793
        %948 = vmatmul.mubr.bf16.gmra.mrb[0].mxu0 %v634
        %v949 = vpop.f32.mrb[0].mxu0
        %v950 = vadd.f32 0.0, %v949
        %v951 = vpop.f32.mrb[0].mxu0
        %v952 = vpop.f32.mrb[0].mxu0
        %v953 = vadd.f32 0.0, %v952
        %v954 = vpop.f32.mrb[0].mxu0
        %955 = vmatprep.mubr.bf16.mxu0 %v796
        %956 = vmatmul.mubr.bf16.gmra.mrb[0].mxu0 %v636
        %v957 = vpop.f32.mrb[0].mxu0
        %v958 = vadd.f32 0.0, %v957
        %v959 = vpop.f32.mrb[0].mxu0
        %v960 = vpop.f32.mrb[0].mxu0
        %v961 = vadd.f32 0.0, %v960
        %v962 = vpop.f32.mrb[0].mxu0
        %963 = vmatprep.mubr.bf16.mxu0 %v799
        %964 = vmatmul.mubr.bf16.gmra.mrb[0].mxu0 %v638
        %v965 = vpop.f32.mrb[0].mxu0
        %v966 = vadd.f32 0.0, %v965
        %v967 = vpop.f32.mrb[0].mxu0
        %v968 = vpop.f32.mrb[0].mxu0
        %v969 = vadd.f32 0.0, %v968
        %v970 = vpop.f32.mrb[0].mxu0
        %971 = vmatprep.mubr.bf16.mxu0 %v802
        %972 = vmatmul.mubr.bf16.gmra.mrb[0].mxu0 %v640
        %v973 = vpop.f32.mrb[0].mxu0
        %v974 = vadd.f32 0.0, %v973
        %v975 = vpop.f32.mrb[0].mxu0
        %v976 = vpop.f32.mrb[0].mxu0
        %v977 = vadd.f32 0.0, %v976
        %v978 = vpop.f32.mrb[0].mxu0
        %979 = vmatprep.mubr.bf16.mxu0 %v805
        %980 = vmatmul.mubr.bf16.gmra.mrb[0].mxu0 %v642
        %v981 = vpop.f32.mrb[0].mxu0
        %v982 = vadd.f32 0.0, %v981
        %v983 = vpop.f32.mrb[0].mxu0
        %v984 = vpop.f32.mrb[0].mxu0
        %v985 = vadd.f32 0.0, %v984
        %v986 = vpop.f32.mrb[0].mxu0
        %987 = vmatprep.mubr.bf16.mxu0 %v808
        %988 = vmatmul.mubr.bf16.gmra.mrb[0].mxu0 %v644
        %v989 = vpop.f32.mrb[0].mxu0
        %v990 = vadd.f32 0.0, %v989
        %v991 = vpop.f32.mrb[0].mxu0
        %v992 = vpop.f32.mrb[0].mxu0
        %v993 = vadd.f32 0.0, %v992
        %v994 = vpop.f32.mrb[0].mxu0
        %995 = vmatprep.mubr.bf16.mxu0 %v811
        %996 = vmatmul.mubr.bf16.gmra.mrb[0].mxu0 %v646
        %v997 = vpop.f32.mrb[0].mxu0
        %v998 = vadd.f32 0.0, %v997
        %v999 = vpop.f32.mrb[0].mxu0
        %v1000 = vpop.f32.mrb[0].mxu0
        %v1001 = vadd.f32 0.0, %v1000
        %v1002 = vpop.f32.mrb[0].mxu0
        %1003 = vmatprep.mubr.bf16.mxu0 %v814
        %1004 = vmatmul.mubr.bf16.gmra.mrb[0].mxu0 %v648
        %v1005 = vpop.f32.mrb[0].mxu0
        %v1006 = vadd.f32 0.0, %v1005
        %v1007 = vpop.f32.mrb[0].mxu0
        %v1008 = vpop.f32.mrb[0].mxu0
        %v1009 = vadd.f32 0.0, %v1008
        %v1010 = vpop.f32.mrb[0].mxu0
        %1011 = vmatprep.mubr.bf16.mxu0 %v817
        %1012 = vmatmul.mubr.bf16.gmra.mrb[0].mxu0 %v650
        %v1013 = vpop.f32.mrb[0].mxu0
        %v1014 = vadd.f32 0.0, %v1013
        %v1015 = vpop.f32.mrb[0].mxu0
        %v1016 = vpop.f32.mrb[0].mxu0
        %v1017 = vadd.f32 0.0, %v1016
        %v1018 = vpop.f32.mrb[0].mxu0
        %1019 = vmatprep.mubr.bf16.mxu0 %v820
        %1020 = vmatmul.mubr.bf16.gmra.mrb[0].mxu0 %v652
        %v1021 = vpop.f32.mrb[0].mxu0
        %v1022 = vadd.f32 0.0, %v1021
        %v1023 = vpop.f32.mrb[0].mxu0
        %v1024 = vpop.f32.mrb[0].mxu0
        %v1025 = vadd.f32 0.0, %v1024
        %v1026 = vpop.f32.mrb[0].mxu0
        %1027 = vmatprep.mubr.bf16.mxu0 %v823
        %1028 = vmatmul.mubr.bf16.gmra.mrb[0].mxu0 %v654
        %v1029 = vpop.f32.mrb[0].mxu0
        %v1030 = vadd.f32 0.0, %v1029
        %v1031 = vpop.f32.mrb[0].mxu0
        %v1032 = vpop.f32.mrb[0].mxu0
        %v1033 = vadd.f32 0.0, %v1032
        %v1034 = vpop.f32.mrb[0].mxu0
        %1035 = vmatprep.mubr.bf16.mxu0 %v826
        %1036 = vmatmul.mubr.bf16.gmra.mrb[0].mxu0 %v656
        %v1037 = vpop.f32.mrb[0].mxu0
        %v1038 = vadd.f32 0.0, %v1037
        %v1039 = vpop.f32.mrb[0].mxu0
        %v1040 = vpop.f32.mrb[0].mxu0
        %v1041 = vadd.f32 0.0, %v1040
        %v1042 = vpop.f32.mrb[0].mxu0
        %1043 = vmatprep.mubr.bf16.mxu0 %v829
        %1044 = vmatmul.mubr.bf16.gmra.mrb[0].mxu0 %v658
        %v1045 = vpop.f32.mrb[0].mxu0
        %v1046 = vadd.f32 0.0, %v1045
        %v1047 = vpop.f32.mrb[0].mxu0
        %v1048 = vpop.f32.mrb[0].mxu0
        %v1049 = vadd.f32 0.0, %v1048
        %v1050 = vpop.f32.mrb[0].mxu0
        %1051 = vmatprep.mubr.bf16.mxu0 %v832
        %1052 = vmatmul.mubr.bf16.gmra.mrb[0].mxu0 %v660
        %v1053 = vpop.f32.mrb[0].mxu0
        %v1054 = vadd.f32 0.0, %v1053
        %v1055 = vpop.f32.mrb[0].mxu0
        %v1056 = vpop.f32.mrb[0].mxu0
        %v1057 = vadd.f32 0.0, %v1056
        %v1058 = vpop.f32.mrb[0].mxu0
        %1059 = vmatprep.mubr.bf16.mxu0 %v835
        %1060 = vmatmul.mubr.bf16.gmra.mrb[0].mxu0 %v662
        %v1061 = vpop.f32.mrb[0].mxu0
        %v1062 = vadd.f32 0.0, %v1061
        %v1063 = vpop.f32.mrb[0].mxu0
        %v1064 = vpop.f32.mrb[0].mxu0
        %v1065 = vadd.f32 0.0, %v1064
        %v1066 = vpop.f32.mrb[0].mxu0
        %1067 = vmatprep.mubr.bf16.mxu0 %v838
        %1068 = vmatmul.mubr.bf16.gmra.mrb[0].mxu0 %v664
        %v1069 = vpop.f32.mrb[0].mxu0
        %v1070 = vadd.f32 0.0, %v1069
        %v1071 = vpop.f32.mrb[0].mxu0
        %v1072 = vpop.f32.mrb[0].mxu0
        %v1073 = vadd.f32 0.0, %v1072
        %v1074 = vpop.f32.mrb[0].mxu0
        %1075 = vmatprep.mubr.bf16.mxu0 %v841
        %1076 = vmatmul.mubr.bf16.gmra.mrb[0].mxu0 %v666
        %v1077 = vpop.f32.mrb[0].mxu0
        %v1078 = vadd.f32 0.0, %v1077
        %v1079 = vpop.f32.mrb[0].mxu0
        %v1080 = vpop.f32.mrb[0].mxu0
        %v1081 = vadd.f32 0.0, %v1080
        %v1082 = vpop.f32.mrb[0].mxu0
        %1083 = vmatprep.mubr.bf16.mxu0 %v844
        %1084 = vmatmul.mubr.bf16.gmra.mrb[0].mxu0 %v668
        %v1085 = vpop.f32.mrb[0].mxu0
        %v1086 = vadd.f32 0.0, %v1085
        %v1087 = vpop.f32.mrb[0].mxu0
        %v1088 = vpop.f32.mrb[0].mxu0
        %v1089 = vadd.f32 0.0, %v1088
        %v1090 = vpop.f32.mrb[0].mxu0
        %1091 = vmatprep.mubr.bf16.mxu0 %v847
        %1092 = vmatmul.mubr.bf16.gmra.mrb[0].mxu0 %v670
        %v1093 = vpop.f32.mrb[0].mxu0
        %v1094 = vadd.f32 0.0, %v1093
        %v1095 = vpop.f32.mrb[0].mxu0
        %v1096 = vpop.f32.mrb[0].mxu0
        %v1097 = vadd.f32 0.0, %v1096
        %v1098 = vpop.f32.mrb[0].mxu0
        %1099 = vmatprep.mubr.bf16.mxu0 %v850
        %1100 = vmatmul.mubr.bf16.gmra.mrb[0].mxu0 %v672
        %v1101 = vpop.f32.mrb[0].mxu0
        %v1102 = vadd.f32 0.0, %v1101
        %v1103 = vpop.f32.mrb[0].mxu0
        %v1104 = vpop.f32.mrb[0].mxu0
        %v1105 = vadd.f32 0.0, %v1104
        %v1106 = vpop.f32.mrb[0].mxu0
        %1107 = vmatprep.mubr.bf16.mxu0 %v853
        %1108 = vmatmul.mubr.bf16.gmra.mrb[0].mxu0 %v674
        %v1109 = vpop.f32.mrb[0].mxu0
        %v1110 = vadd.f32 0.0, %v1109
        %v1111 = vpop.f32.mrb[0].mxu0
        %v1112 = vpop.f32.mrb[0].mxu0
        %v1113 = vadd.f32 0.0, %v1112
        %v1114 = vpop.f32.mrb[0].mxu0
        %1115 = vmatprep.mubr.bf16.mxu0 %v856
        %1116 = vmatmul.mubr.bf16.gmra.mrb[0].mxu0 %v676
        %v1117 = vpop.f32.mrb[0].mxu0
        %v1118 = vadd.f32 0.0, %v1117
        %v1119 = vpop.f32.mrb[0].mxu0
        %v1120 = vpop.f32.mrb[0].mxu0
        %v1121 = vadd.f32 0.0, %v1120
        %v1122 = vpop.f32.mrb[0].mxu0
        %1123 = vmatprep.mubr.bf16.mxu0 %v859
        %1124 = vmatmul.mubr.bf16.gmra.mrb[0].mxu0 %v678
        %v1125 = vpop.f32.mrb[0].mxu0
        %v1126 = vadd.f32 0.0, %v1125
        %v1127 = vpop.f32.mrb[0].mxu0
        %v1128 = vpop.f32.mrb[0].mxu0
        %v1129 = vadd.f32 0.0, %v1128
        %v1130 = vpop.f32.mrb[0].mxu0
        %1131 = vmatprep.mubr.bf16.mxu0 %v862
        %1132 = vmatmul.mubr.bf16.gmra.mrb[0].mxu0 %v680
        %v1133 = vpop.f32.mrb[0].mxu0
        %v1134 = vadd.f32 0.0, %v1133
        %v1135 = vpop.f32.mrb[0].mxu0
        %v1136 = vpop.f32.mrb[0].mxu0
        %v1137 = vadd.f32 0.0, %v1136
        %v1138 = vpop.f32.mrb[0].mxu0
        %1139 = vmatprep.mubr.bf16.mxu0 %v865
        %1140 = vmatmul.mubr.bf16.gmra.mrb[0].mxu0 %v682
        %v1141 = vpop.f32.mrb[0].mxu0
        %v1142 = vadd.f32 0.0, %v1141
        %v1143 = vpop.f32.mrb[0].mxu0
        %v1144 = vpop.f32.mrb[0].mxu0
        %v1145 = vadd.f32 0.0, %v1144
        %v1146 = vpop.f32.mrb[0].mxu0
        %1147 = vmatprep.mubr.bf16.mxu0 %v868
        %1148 = vmatmul.mubr.bf16.gmra.mrb[0].mxu0 %v684
        %v1149 = vpop.f32.mrb[0].mxu0
        %v1150 = vadd.f32 0.0, %v1149
        %v1151 = vpop.f32.mrb[0].mxu0
        %v1152 = vpop.f32.mrb[0].mxu0
        %v1153 = vadd.f32 0.0, %v1152
        %v1154 = vpop.f32.mrb[0].mxu0
        %1155 = vmatprep.mubr.bf16.mxu0 %v871
        %1156 = vmatmul.mubr.bf16.gmra.mrb[0].mxu0 %v686
        %v1157 = vpop.f32.mrb[0].mxu0
        %v1158 = vadd.f32 0.0, %v1157
        %v1159 = vpop.f32.mrb[0].mxu0
        %v1160 = vpop.f32.mrb[0].mxu0
        %v1161 = vadd.f32 0.0, %v1160
        %v1162 = vpop.f32.mrb[0].mxu0
        %1163 = vmatprep.mubr.bf16.mxu0 %v874
        %1164 = vmatmul.mubr.bf16.gmra.mrb[0].mxu0 %v688
        %v1165 = vpop.f32.mrb[0].mxu0
        %v1166 = vadd.f32 0.0, %v1165
        %v1167 = vpop.f32.mrb[0].mxu0
        %v1168 = vpop.f32.mrb[0].mxu0
        %v1169 = vadd.f32 0.0, %v1168
        %v1170 = vpop.f32.mrb[0].mxu0
        %1171 = vdwg.mxu0
        %v1172 = vadd.f32 %v287, %v918
        %v1173 = vadd.f32 %v288, %v921
        %v1174 = vadd.f32 %v289, %v926
        %v1175 = vadd.f32 %v290, %v929
        %v1176 = vadd.f32 %v291, %v934
        %v1177 = vadd.f32 %v292, %v937
        %v1178 = vadd.f32 %v293, %v942
        %v1179 = vadd.f32 %v294, %v945
        %v1180 = vadd.f32 %v295, %v950
        %v1181 = vadd.f32 %v296, %v953
        %v1182 = vadd.f32 %v297, %v958
        %v1183 = vadd.f32 %v298, %v961
        %v1184 = vadd.f32 %v299, %v966
        %v1185 = vadd.f32 %v300, %v969
        %v1186 = vadd.f32 %v301, %v974
        %v1187 = vadd.f32 %v302, %v977
        %v1188 = vadd.f32 %v303, %v982
        %v1189 = vadd.f32 %v304, %v985
        %v1190 = vadd.f32 %v305, %v990
        %v1191 = vadd.f32 %v306, %v993
        %v1192 = vadd.f32 %v307, %v998
        %v1193 = vadd.f32 %v308, %v1001
        %v1194 = vadd.f32 %v309, %v1006
        %v1195 = vadd.f32 %v310, %v1009
        %v1196 = vadd.f32 %v311, %v1014
        %v1197 = vadd.f32 %v312, %v1017
        %v1198 = vadd.f32 %v313, %v1022
        %v1199 = vadd.f32 %v314, %v1025
        %v1200 = vadd.f32 %v315, %v1030
        %v1201 = vadd.f32 %v316, %v1033
        %v1202 = vadd.f32 %v317, %v1038
        %v1203 = vadd.f32 %v318, %v1041
        %v1204 = vadd.f32 %v319, %v1046
        %v1205 = vadd.f32 %v320, %v1049
        %v1206 = vadd.f32 %v321, %v1054
        %v1207 = vadd.f32 %v322, %v1057
        %v1208 = vadd.f32 %v323, %v1062
        %v1209 = vadd.f32 %v324, %v1065
        %v1210 = vadd.f32 %v325, %v1070
        %v1211 = vadd.f32 %v326, %v1073
        %v1212 = vadd.f32 %v327, %v1078
        %v1213 = vadd.f32 %v328, %v1081
        %v1214 = vadd.f32 %v329, %v1086
        %v1215 = vadd.f32 %v330, %v1089
        %v1216 = vadd.f32 %v331, %v1094
        %v1217 = vadd.f32 %v332, %v1097
        %v1218 = vadd.f32 %v333, %v1102
        %v1219 = vadd.f32 %v334, %v1105
        %v1220 = vadd.f32 %v335, %v1110
        %v1221 = vadd.f32 %v336, %v1113
        %v1222 = vadd.f32 %v337, %v1118
        %v1223 = vadd.f32 %v338, %v1121
        %v1224 = vadd.f32 %v339, %v1126
        %v1225 = vadd.f32 %v340, %v1129
        %v1226 = vadd.f32 %v341, %v1134
        %v1227 = vadd.f32 %v342, %v1137
        %v1228 = vadd.f32 %v343, %v1142
        %v1229 = vadd.f32 %v344, %v1145
        %v1230 = vadd.f32 %v345, %v1150
        %v1231 = vadd.f32 %v346, %v1153
        %v1232 = vadd.f32 %v347, %v1158
        %v1233 = vadd.f32 %v348, %v1161
        %v1234 = vadd.f32 %v349, %v1166
        %v1235 = vadd.f32 %v350, %v1169
        %1236 = vst [vmem:[#allocation2] sm:$0xff] %v1172
        %1237 = vst [vmem:[#allocation2 + $0x8] sm:$0xff] %v1173
        %1238 = vst [vmem:[#allocation2 + $0x10] sm:$0xff] %v1174
        %1239 = vst [vmem:[#allocation2 + $0x18] sm:$0xff] %v1175
        %1240 = vst [vmem:[#allocation2 + $0x20] sm:$0xff] %v1176
        %1241 = vst [vmem:[#allocation2 + $0x28] sm:$0xff] %v1177
        %1242 = vst [vmem:[#allocation2 + $0x30] sm:$0xff] %v1178
        %1243 = vst [vmem:[#allocation2 + $0x38] sm:$0xff] %v1179
        %1244 = vst [vmem:[#allocation2 + $0x40] sm:$0xff] %v1180
        %1245 = vst [vmem:[#allocation2 + $0x48] sm:$0xff] %v1181
        %1246 = vst [vmem:[#allocation2 + $0x50] sm:$0xff] %v1182
        %1247 = vst [vmem:[#allocation2 + $0x58] sm:$0xff] %v1183
        %1248 = vst [vmem:[#allocation2 + $0x60] sm:$0xff] %v1184
        %1249 = vst [vmem:[#allocation2 + $0x68] sm:$0xff] %v1185
        %1250 = vst [vmem:[#allocation2 + $0x70] sm:$0xff] %v1186
        %1251 = vst [vmem:[#allocation2 + $0x78] sm:$0xff] %v1187
        %1252 = vst [vmem:[#allocation2 + $0x80] sm:$0xff] %v1188
        %1253 = vst [vmem:[#allocation2 + $0x88] sm:$0xff] %v1189
        %1254 = vst [vmem:[#allocation2 + $0x90] sm:$0xff] %v1190
        %1255 = vst [vmem:[#allocation2 + $0x98] sm:$0xff] %v1191
        %1256 = vst [vmem:[#allocation2 + $0xa0] sm:$0xff] %v1192
        %1257 = vst [vmem:[#allocation2 + $0xa8] sm:$0xff] %v1193
        %1258 = vst [vmem:[#allocation2 + $0xb0] sm:$0xff] %v1194
        %1259 = vst [vmem:[#allocation2 + $0xb8] sm:$0xff] %v1195
        %1260 = vst [vmem:[#allocation2 + $0xc0] sm:$0xff] %v1196
        %1261 = vst [vmem:[#allocation2 + $0xc8] sm:$0xff] %v1197
        %1262 = vst [vmem:[#allocation2 + $0xd0] sm:$0xff] %v1198
        %1263 = vst [vmem:[#allocation2 + $0xd8] sm:$0xff] %v1199
        %1264 = vst [vmem:[#allocation2 + $0xe0] sm:$0xff] %v1200
        %1265 = vst [vmem:[#allocation2 + $0xe8] sm:$0xff] %v1201
        %1266 = vst [vmem:[#allocation2 + $0xf0] sm:$0xff] %v1202
        %1267 = vst [vmem:[#allocation2 + $0xf8] sm:$0xff] %v1203
        %1268 = vst [vmem:[#allocation2 + $0x100] sm:$0xff] %v1204
        %1269 = vst [vmem:[#allocation2 + $0x108] sm:$0xff] %v1205
        %1270 = vst [vmem:[#allocation2 + $0x110] sm:$0xff] %v1206
        %1271 = vst [vmem:[#allocation2 + $0x118] sm:$0xff] %v1207
        %1272 = vst [vmem:[#allocation2 + $0x120] sm:$0xff] %v1208
        %1273 = vst [vmem:[#allocation2 + $0x128] sm:$0xff] %v1209
        %1274 = vst [vmem:[#allocation2 + $0x130] sm:$0xff] %v1210
        %1275 = vst [vmem:[#allocation2 + $0x138] sm:$0xff] %v1211
        %1276 = vst [vmem:[#allocation2 + $0x140] sm:$0xff] %v1212
        %1277 = vst [vmem:[#allocation2 + $0x148] sm:$0xff] %v1213
        %1278 = vst [vmem:[#allocation2 + $0x150] sm:$0xff] %v1214
        %1279 = vst [vmem:[#allocation2 + $0x158] sm:$0xff] %v1215
        %1280 = vst [vmem:[#allocation2 + $0x160] sm:$0xff] %v1216
        %1281 = vst [vmem:[#allocation2 + $0x168] sm:$0xff] %v1217
        %1282 = vst [vmem:[#allocation2 + $0x170] sm:$0xff] %v1218
        %1283 = vst [vmem:[#allocation2 + $0x178] sm:$0xff] %v1219
        %1284 = vst [vmem:[#allocation2 + $0x180] sm:$0xff] %v1220
        %1285 = vst [vmem:[#allocation2 + $0x188] sm:$0xff] %v1221
        %1286 = vst [vmem:[#allocation2 + $0x190] sm:$0xff] %v1222
        %1287 = vst [vmem:[#allocation2 + $0x198] sm:$0xff] %v1223
        %1288 = vst [vmem:[#allocation2 + $0x1a0] sm:$0xff] %v1224
        %1289 = vst [vmem:[#allocation2 + $0x1a8] sm:$0xff] %v1225
        %1290 = vst [vmem:[#allocation2 + $0x1b0] sm:$0xff] %v1226
        %1291 = vst [vmem:[#allocation2 + $0x1b8] sm:$0xff] %v1227
        %1292 = vst [vmem:[#allocation2 + $0x1c0] sm:$0xff] %v1228
        %1293 = vst [vmem:[#allocation2 + $0x1c8] sm:$0xff] %v1229
        %1294 = vst [vmem:[#allocation2 + $0x1d0] sm:$0xff] %v1230
        %1295 = vst [vmem:[#allocation2 + $0x1d8] sm:$0xff] %v1231
        %1296 = vst [vmem:[#allocation2 + $0x1e0] sm:$0xff] %v1232
        %1297 = vst [vmem:[#allocation2 + $0x1e8] sm:$0xff] %v1233
        %1298 = vst [vmem:[#allocation2 + $0x1f0] sm:$0xff] %v1234
        %1299 = vst [vmem:[#allocation2 + $0x1f8] sm:$0xff] %v1235
        // Predicated region
        $region33: #{tpu_custom_call.1} parent=27 // pred_check
          %p1300 = pneg %p219
        $region34: #{tpu_custom_call.1} parent=27 // pred_check_branch
          %1302 = sbr.rel (%p1300) target = $region36
        $region35: #{tpu_custom_call.1} parent=27 // pred_region
          %v1303 = vld [vmem:[#allocation2] sm:$0xff]
          %v1304 = vld [vmem:[#allocation2 + $0x8] sm:$0xff]
          %v1305 = vld [vmem:[#allocation2 + $0x10] sm:$0xff]
          %v1306 = vld [vmem:[#allocation2 + $0x18] sm:$0xff]
          %v1307 = vld [vmem:[#allocation2 + $0x20] sm:$0xff]
          %v1308 = vld [vmem:[#allocation2 + $0x28] sm:$0xff]
          %v1309 = vld [vmem:[#allocation2 + $0x30] sm:$0xff]
          %v1310 = vld [vmem:[#allocation2 + $0x38] sm:$0xff]
          %v1311 = vld [vmem:[#allocation2 + $0x40] sm:$0xff]
          %v1312 = vld [vmem:[#allocation2 + $0x48] sm:$0xff]
          %v1313 = vld [vmem:[#allocation2 + $0x50] sm:$0xff]
          %v1314 = vld [vmem:[#allocation2 + $0x58] sm:$0xff]
          %v1315 = vld [vmem:[#allocation2 + $0x60] sm:$0xff]
          %v1316 = vld [vmem:[#allocation2 + $0x68] sm:$0xff]
          %v1317 = vld [vmem:[#allocation2 + $0x70] sm:$0xff]
          %v1318 = vld [vmem:[#allocation2 + $0x78] sm:$0xff]
          %v1319 = vld [vmem:[#allocation2 + $0x80] sm:$0xff]
          %v1320 = vld [vmem:[#allocation2 + $0x88] sm:$0xff]
          %v1321 = vld [vmem:[#allocation2 + $0x90] sm:$0xff]
          %v1322 = vld [vmem:[#allocation2 + $0x98] sm:$0xff]
          %v1323 = vld [vmem:[#allocation2 + $0xa0] sm:$0xff]
          %v1324 = vld [vmem:[#allocation2 + $0xa8] sm:$0xff]
          %v1325 = vld [vmem:[#allocation2 + $0xb0] sm:$0xff]
          %v1326 = vld [vmem:[#allocation2 + $0xb8] sm:$0xff]
          %v1327 = vld [vmem:[#allocation2 + $0xc0] sm:$0xff]
          %v1328 = vld [vmem:[#allocation2 + $0xc8] sm:$0xff]
          %v1329 = vld [vmem:[#allocation2 + $0xd0] sm:$0xff]
          %v1330 = vld [vmem:[#allocation2 + $0xd8] sm:$0xff]
          %v1331 = vld [vmem:[#allocation2 + $0xe0] sm:$0xff]
          %v1332 = vld [vmem:[#allocation2 + $0xe8] sm:$0xff]
          %v1333 = vld [vmem:[#allocation2 + $0xf0] sm:$0xff]
          %v1334 = vld [vmem:[#allocation2 + $0xf8] sm:$0xff]
          %v1335 = vld [vmem:[#allocation2 + $0x100] sm:$0xff]
          %v1336 = vld [vmem:[#allocation2 + $0x108] sm:$0xff]
          %v1337 = vld [vmem:[#allocation2 + $0x110] sm:$0xff]
          %v1338 = vld [vmem:[#allocation2 + $0x118] sm:$0xff]
          %v1339 = vld [vmem:[#allocation2 + $0x120] sm:$0xff]
          %v1340 = vld [vmem:[#allocation2 + $0x128] sm:$0xff]
          %v1341 = vld [vmem:[#allocation2 + $0x130] sm:$0xff]
          %v1342 = vld [vmem:[#allocation2 + $0x138] sm:$0xff]
          %v1343 = vld [vmem:[#allocation2 + $0x140] sm:$0xff]
          %v1344 = vld [vmem:[#allocation2 + $0x148] sm:$0xff]
          %v1345 = vld [vmem:[#allocation2 + $0x150] sm:$0xff]
          %v1346 = vld [vmem:[#allocation2 + $0x158] sm:$0xff]
          %v1347 = vld [vmem:[#allocation2 + $0x160] sm:$0xff]
          %v1348 = vld [vmem:[#allocation2 + $0x168] sm:$0xff]
          %v1349 = vld [vmem:[#allocation2 + $0x170] sm:$0xff]
          %v1350 = vld [vmem:[#allocation2 + $0x178] sm:$0xff]
          %v1351 = vld [vmem:[#allocation2 + $0x180] sm:$0xff]
          %v1352 = vld [vmem:[#allocation2 + $0x188] sm:$0xff]
          %v1353 = vld [vmem:[#allocation2 + $0x190] sm:$0xff]
          %v1354 = vld [vmem:[#allocation2 + $0x198] sm:$0xff]
          %v1355 = vld [vmem:[#allocation2 + $0x1a0] sm:$0xff]
          %v1356 = vld [vmem:[#allocation2 + $0x1a8] sm:$0xff]
          %v1357 = vld [vmem:[#allocation2 + $0x1b0] sm:$0xff]
          %v1358 = vld [vmem:[#allocation2 + $0x1b8] sm:$0xff]
          %v1359 = vld [vmem:[#allocation2 + $0x1c0] sm:$0xff]
          %v1360 = vld [vmem:[#allocation2 + $0x1c8] sm:$0xff]
          %v1361 = vld [vmem:[#allocation2 + $0x1d0] sm:$0xff]
          %v1362 = vld [vmem:[#allocation2 + $0x1d8] sm:$0xff]
          %v1363 = vld [vmem:[#allocation2 + $0x1e0] sm:$0xff]
          %v1364 = vld [vmem:[#allocation2 + $0x1e8] sm:$0xff]
          %v1365 = vld [vmem:[#allocation2 + $0x1f0] sm:$0xff]
          %v1366 = vld [vmem:[#allocation2 + $0x1f8] sm:$0xff]
          %v1367 = vpack.c.bf16 %v1304, %v1303
          %v1368 = vpack.c.bf16 %v1306, %v1305
          %v1369 = vpack.c.bf16 %v1308, %v1307
          %v1370 = vpack.c.bf16 %v1310, %v1309
          %v1371 = vpack.c.bf16 %v1312, %v1311
          %v1372 = vpack.c.bf16 %v1314, %v1313
          %v1373 = vpack.c.bf16 %v1316, %v1315
          %v1374 = vpack.c.bf16 %v1318, %v1317
          %v1375 = vpack.c.bf16 %v1320, %v1319
          %v1376 = vpack.c.bf16 %v1322, %v1321
          %v1377 = vpack.c.bf16 %v1324, %v1323
          %v1378 = vpack.c.bf16 %v1326, %v1325
          %v1379 = vpack.c.bf16 %v1328, %v1327
          %v1380 = vpack.c.bf16 %v1330, %v1329
          %v1381 = vpack.c.bf16 %v1332, %v1331
          %v1382 = vpack.c.bf16 %v1334, %v1333
          %v1383 = vpack.c.bf16 %v1336, %v1335
          %v1384 = vpack.c.bf16 %v1338, %v1337
          %v1385 = vpack.c.bf16 %v1340, %v1339
          %v1386 = vpack.c.bf16 %v1342, %v1341
          %v1387 = vpack.c.bf16 %v1344, %v1343
          %v1388 = vpack.c.bf16 %v1346, %v1345
          %v1389 = vpack.c.bf16 %v1348, %v1347
          %v1390 = vpack.c.bf16 %v1350, %v1349
          %v1391 = vpack.c.bf16 %v1352, %v1351
          %v1392 = vpack.c.bf16 %v1354, %v1353
          %v1393 = vpack.c.bf16 %v1356, %v1355
          %v1394 = vpack.c.bf16 %v1358, %v1357
          %v1395 = vpack.c.bf16 %v1360, %v1359
          %v1396 = vpack.c.bf16 %v1362, %v1361
          %v1397 = vpack.c.bf16 %v1364, %v1363
          %v1398 = vpack.c.bf16 %v1366, %v1365
          %v1431 = vunpack.c.l.b16 %v1367
          %v1432 = vunpack.c.h.b16 %v1367
          %v1433 = vunpack.c.l.b16 %v1368
          %v1434 = vunpack.c.h.b16 %v1368
          %v1435 = vunpack.c.l.b16 %v1369
          %v1436 = vunpack.c.h.b16 %v1369
          %v1437 = vunpack.c.l.b16 %v1370
          %v1438 = vunpack.c.h.b16 %v1370
          %v1439 = vunpack.c.l.b16 %v1371
          %v1440 = vunpack.c.h.b16 %v1371
          %v1441 = vunpack.c.l.b16 %v1372
          %v1442 = vunpack.c.h.b16 %v1372
          %v1443 = vunpack.c.l.b16 %v1373
          %v1444 = vunpack.c.h.b16 %v1373
          %v1445 = vunpack.c.l.b16 %v1374
          %v1446 = vunpack.c.h.b16 %v1374
          %v1447 = vunpack.c.l.b16 %v1375
          %v1448 = vunpack.c.h.b16 %v1375
          %v1449 = vunpack.c.l.b16 %v1376
          %v1450 = vunpack.c.h.b16 %v1376
          %v1451 = vunpack.c.l.b16 %v1377
          %v1452 = vunpack.c.h.b16 %v1377
          %v1453 = vunpack.c.l.b16 %v1378
          %v1454 = vunpack.c.h.b16 %v1378
          %v1455 = vunpack.c.l.b16 %v1379
          %v1456 = vunpack.c.h.b16 %v1379
          %v1457 = vunpack.c.l.b16 %v1380
          %v1458 = vunpack.c.h.b16 %v1380
          %v1459 = vunpack.c.l.b16 %v1381
          %v1460 = vunpack.c.h.b16 %v1381
          %v1461 = vunpack.c.l.b16 %v1382
          %v1462 = vunpack.c.h.b16 %v1382
          %v1463 = vunpack.c.l.b16 %v1383
          %v1464 = vunpack.c.h.b16 %v1383
          %v1465 = vunpack.c.l.b16 %v1384
          %v1466 = vunpack.c.h.b16 %v1384
          %v1467 = vunpack.c.l.b16 %v1385
          %v1468 = vunpack.c.h.b16 %v1385
          %v1469 = vunpack.c.l.b16 %v1386
          %v1470 = vunpack.c.h.b16 %v1386
          %v1471 = vunpack.c.l.b16 %v1387
          %v1472 = vunpack.c.h.b16 %v1387
          %v1473 = vunpack.c.l.b16 %v1388
          %v1474 = vunpack.c.h.b16 %v1388
          %v1475 = vunpack.c.l.b16 %v1389
          %v1476 = vunpack.c.h.b16 %v1389
          %v1477 = vunpack.c.l.b16 %v1390
          %v1478 = vunpack.c.h.b16 %v1390
          %v1479 = vunpack.c.l.b16 %v1391
          %v1480 = vunpack.c.h.b16 %v1391
          %v1481 = vunpack.c.l.b16 %v1392
          %v1482 = vunpack.c.h.b16 %v1392
          %v1483 = vunpack.c.l.b16 %v1393
          %v1484 = vunpack.c.h.b16 %v1393
          %v1485 = vunpack.c.l.b16 %v1394
          %v1486 = vunpack.c.h.b16 %v1394
          %v1487 = vunpack.c.l.b16 %v1395
          %v1488 = vunpack.c.h.b16 %v1395
          %v1489 = vunpack.c.l.b16 %v1396
          %v1490 = vunpack.c.h.b16 %v1396
          %v1491 = vunpack.c.l.b16 %v1397
          %v1492 = vunpack.c.h.b16 %v1397
          %v1493 = vunpack.c.l.b16 %v1398
          %v1494 = vunpack.c.h.b16 %v1398
          %v1495 = vpack.c.b16 %v1431, %v1431
          %v1496 = vpack.c.b16 %v1432, %v1432
          %v1497 = vpack.c.b16 %v1433, %v1433
          %v1498 = vpack.c.b16 %v1434, %v1434
          %v1499 = vpack.c.b16 %v1435, %v1435
          %v1500 = vpack.c.b16 %v1436, %v1436
          %v1501 = vpack.c.b16 %v1437, %v1437
          %v1502 = vpack.c.b16 %v1438, %v1438
          %v1503 = vpack.c.b16 %v1439, %v1439
          %v1504 = vpack.c.b16 %v1440, %v1440
          %v1505 = vpack.c.b16 %v1441, %v1441
          %v1506 = vpack.c.b16 %v1442, %v1442
          %v1507 = vpack.c.b16 %v1443, %v1443
          %v1508 = vpack.c.b16 %v1444, %v1444
          %v1509 = vpack.c.b16 %v1445, %v1445
          %v1510 = vpack.c.b16 %v1446, %v1446
          %v1511 = vpack.c.b16 %v1447, %v1447
          %v1512 = vpack.c.b16 %v1448, %v1448
          %v1513 = vpack.c.b16 %v1449, %v1449
          %v1514 = vpack.c.b16 %v1450, %v1450
          %v1515 = vpack.c.b16 %v1451, %v1451
          %v1516 = vpack.c.b16 %v1452, %v1452
          %v1517 = vpack.c.b16 %v1453, %v1453
          %v1518 = vpack.c.b16 %v1454, %v1454
          %v1519 = vpack.c.b16 %v1455, %v1455
          %v1520 = vpack.c.b16 %v1456, %v1456
          %v1521 = vpack.c.b16 %v1457, %v1457
          %v1522 = vpack.c.b16 %v1458, %v1458
          %v1523 = vpack.c.b16 %v1459, %v1459
          %v1524 = vpack.c.b16 %v1460, %v1460
          %v1525 = vpack.c.b16 %v1461, %v1461
          %v1526 = vpack.c.b16 %v1462, %v1462
          %v1527 = vpack.c.b16 %v1463, %v1463
          %v1528 = vpack.c.b16 %v1464, %v1464
          %v1529 = vpack.c.b16 %v1465, %v1465
          %v1530 = vpack.c.b16 %v1466, %v1466
          %v1531 = vpack.c.b16 %v1467, %v1467
          %v1532 = vpack.c.b16 %v1468, %v1468
          %v1533 = vpack.c.b16 %v1469, %v1469
          %v1534 = vpack.c.b16 %v1470, %v1470
          %v1535 = vpack.c.b16 %v1471, %v1471
          %v1536 = vpack.c.b16 %v1472, %v1472
          %v1537 = vpack.c.b16 %v1473, %v1473
          %v1538 = vpack.c.b16 %v1474, %v1474
          %v1539 = vpack.c.b16 %v1475, %v1475
          %v1540 = vpack.c.b16 %v1476, %v1476
          %v1541 = vpack.c.b16 %v1477, %v1477
          %v1542 = vpack.c.b16 %v1478, %v1478
          %v1543 = vpack.c.b16 %v1479, %v1479
          %v1544 = vpack.c.b16 %v1480, %v1480
          %v1545 = vpack.c.b16 %v1481, %v1481
          %v1546 = vpack.c.b16 %v1482, %v1482
          %v1547 = vpack.c.b16 %v1483, %v1483
          %v1548 = vpack.c.b16 %v1484, %v1484
          %v1549 = vpack.c.b16 %v1485, %v1485
          %v1550 = vpack.c.b16 %v1486, %v1486
          %v1551 = vpack.c.b16 %v1487, %v1487
          %v1552 = vpack.c.b16 %v1488, %v1488
          %v1553 = vpack.c.b16 %v1489, %v1489
          %v1554 = vpack.c.b16 %v1490, %v1490
          %v1555 = vpack.c.b16 %v1491, %v1491
          %v1556 = vpack.c.b16 %v1492, %v1492
          %v1557 = vpack.c.b16 %v1493, %v1493
          %v1558 = vpack.c.b16 %v1494, %v1494
          %1623 = vst [vmem:[%s195] sm:$0xf] %v1495
          %1624 = vst [vmem:[%s195 + $0x4] sm:$0xf] %v1496
          %1625 = vst [vmem:[%s195 + $0x8] sm:$0xf] %v1497
          %1626 = vst [vmem:[%s195 + $0xc] sm:$0xf] %v1498
          %1627 = vst [vmem:[%s195 + $0x10] sm:$0xf] %v1499
          %1628 = vst [vmem:[%s195 + $0x14] sm:$0xf] %v1500
          %1629 = vst [vmem:[%s195 + $0x18] sm:$0xf] %v1501
          %1630 = vst [vmem:[%s195 + $0x1c] sm:$0xf] %v1502
          %1631 = vst [vmem:[%s195 + $0x20] sm:$0xf] %v1503
          %1632 = vst [vmem:[%s195 + $0x24] sm:$0xf] %v1504
          %1633 = vst [vmem:[%s195 + $0x28] sm:$0xf] %v1505
          %1634 = vst [vmem:[%s195 + $0x2c] sm:$0xf] %v1506
          %1635 = vst [vmem:[%s195 + $0x30] sm:$0xf] %v1507
          %1636 = vst [vmem:[%s195 + $0x34] sm:$0xf] %v1508
          %1637 = vst [vmem:[%s195 + $0x38] sm:$0xf] %v1509
          %1638 = vst [vmem:[%s195 + $0x3c] sm:$0xf] %v1510
          %1639 = vst [vmem:[%s195 + $0x40] sm:$0xf] %v1511
          %1640 = vst [vmem:[%s195 + $0x44] sm:$0xf] %v1512
          %1641 = vst [vmem:[%s195 + $0x48] sm:$0xf] %v1513
          %1642 = vst [vmem:[%s195 + $0x4c] sm:$0xf] %v1514
          %1643 = vst [vmem:[%s195 + $0x50] sm:$0xf] %v1515
          %1644 = vst [vmem:[%s195 + $0x54] sm:$0xf] %v1516
          %1645 = vst [vmem:[%s195 + $0x58] sm:$0xf] %v1517
          %1646 = vst [vmem:[%s195 + $0x5c] sm:$0xf] %v1518
          %1647 = vst [vmem:[%s195 + $0x60] sm:$0xf] %v1519
          %1648 = vst [vmem:[%s195 + $0x64] sm:$0xf] %v1520
          %1649 = vst [vmem:[%s195 + $0x68] sm:$0xf] %v1521
          %1650 = vst [vmem:[%s195 + $0x6c] sm:$0xf] %v1522
          %1651 = vst [vmem:[%s195 + $0x70] sm:$0xf] %v1523
          %1652 = vst [vmem:[%s195 + $0x74] sm:$0xf] %v1524
          %1653 = vst [vmem:[%s195 + $0x78] sm:$0xf] %v1525
          %1654 = vst [vmem:[%s195 + $0x7c] sm:$0xf] %v1526
          %1655 = vst [vmem:[%s195 + $0x80] sm:$0xf] %v1527
          %1656 = vst [vmem:[%s195 + $0x84] sm:$0xf] %v1528
          %1657 = vst [vmem:[%s195 + $0x88] sm:$0xf] %v1529
          %1658 = vst [vmem:[%s195 + $0x8c] sm:$0xf] %v1530
          %1659 = vst [vmem:[%s195 + $0x90] sm:$0xf] %v1531
          %1660 = vst [vmem:[%s195 + $0x94] sm:$0xf] %v1532
          %1661 = vst [vmem:[%s195 + $0x98] sm:$0xf] %v1533
          %1662 = vst [vmem:[%s195 + $0x9c] sm:$0xf] %v1534
          %1663 = vst [vmem:[%s195 + $0xa0] sm:$0xf] %v1535
          %1664 = vst [vmem:[%s195 + $0xa4] sm:$0xf] %v1536
          %1665 = vst [vmem:[%s195 + $0xa8] sm:$0xf] %v1537
          %1666 = vst [vmem:[%s195 + $0xac] sm:$0xf] %v1538
          %1667 = vst [vmem:[%s195 + $0xb0] sm:$0xf] %v1539
          %1668 = vst [vmem:[%s195 + $0xb4] sm:$0xf] %v1540
          %1669 = vst [vmem:[%s195 + $0xb8] sm:$0xf] %v1541
          %1670 = vst [vmem:[%s195 + $0xbc] sm:$0xf] %v1542
          %1671 = vst [vmem:[%s195 + $0xc0] sm:$0xf] %v1543
          %1672 = vst [vmem:[%s195 + $0xc4] sm:$0xf] %v1544
          %1673 = vst [vmem:[%s195 + $0xc8] sm:$0xf] %v1545
          %1674 = vst [vmem:[%s195 + $0xcc] sm:$0xf] %v1546
          %1675 = vst [vmem:[%s195 + $0xd0] sm:$0xf] %v1547
          %1676 = vst [vmem:[%s195 + $0xd4] sm:$0xf] %v1548
          %1677 = vst [vmem:[%s195 + $0xd8] sm:$0xf] %v1549
          %1678 = vst [vmem:[%s195 + $0xdc] sm:$0xf] %v1550
          %1679 = vst [vmem:[%s195 + $0xe0] sm:$0xf] %v1551
          %1680 = vst [vmem:[%s195 + $0xe4] sm:$0xf] %v1552
          %1681 = vst [vmem:[%s195 + $0xe8] sm:$0xf] %v1553
          %1682 = vst [vmem:[%s195 + $0xec] sm:$0xf] %v1554
          %1683 = vst [vmem:[%s195 + $0xf0] sm:$0xf] %v1555
          %1684 = vst [vmem:[%s195 + $0xf4] sm:$0xf] %v1556
          %1685 = vst [vmem:[%s195 + $0xf8] sm:$0xf] %v1557
          %1686 = vst [vmem:[%s195 + $0xfc] sm:$0xf] %v1558
        $region36: #{tpu_custom_call.1} parent=27 // pred_fallthru
          _
        %s1687 = sand.u32 %s101, 1
        %s1688 = scalar_lea.sflag [#allocation4], %s1687
        %s1689 = sand.u32 %s101, 1
        %s1690 = smul.addr %s1689, 256
        %s1691 = scalar_lea.vmem [#allocation3], %s1690
        // Predicated region
        $region37: #{tpu_custom_call.1} parent=27 // pred_check
          %p1692 = pneg %p111
        $region38: #{tpu_custom_call.1} parent=27 // pred_check_branch
          %1694 = sbr.rel (%p1692) target = $region40
        $region39: #{tpu_custom_call.1} parent=27 // pred_region
          %s1695 = smul.u32 64, %s21
          %s1697 = ssub.s32 4096, 4096
          %1698 = vsyncadd %s1688, %s1697
          %s1699 = sadd.s32 %s22, %s1695
          %s1700 = smul.addr %s1699, 64
          %s1701 = scalar_lea.hbm %s2, %s1700
          %s1702 = sshll.u32 %s1691, 4
          %s1703 = int_to_ptr.vmem [resolvable:$true] %s1702
          %1708 = dma.vmem_to_hbm [thread:$0]  %s1703, 4096, %s1701, %s1688, 64, 64, 4
        $region40: #{tpu_custom_call.1} parent=27 // pred_fallthru
          _
      $region28: #{tpu_custom_call.1} parent=5 // pred_fallthru
        _
      %p1709 = scmp.le.s32.totalorder 2, %s11
      // Predicated region
      $region41: #{tpu_custom_call.1} parent=5 // pred_check
        %p1710 = pneg %p1709
      $region42: #{tpu_custom_call.1} parent=5 // pred_check_branch
        %1712 = sbr.rel (%p1710) target = $region44
      $region43: #{tpu_custom_call.1} parent=5 // pred_region
        %s1713 = ssub.s32 %s11, 2
        // Predicated region
        $region45: #{tpu_custom_call.1} parent=43 // pred_check
          %p1714 = pneg %p117
        $region46: #{tpu_custom_call.1} parent=43 // pred_check_branch
          %1716 = sbr.rel (%p1714) target = $region48
        $region47: #{tpu_custom_call.1} parent=43 // pred_region
          %s1717 = sand.u32 %s102, 1
          %s1718 = scalar_lea.sflag [#allocation4], %s1717
          %s1719 = sand.u32 %s102, 1
          %s1720 = smul.addr %s1719, 256
          %s1721 = scalar_lea.vmem [#allocation3], %s1720
          %1722 = dma.done %s1718, 4096
        $region48: #{tpu_custom_call.1} parent=43 // pred_fallthru
          _
      $region44: #{tpu_custom_call.1} parent=5 // pred_fallthru
        _
    $region6: #{tpu_custom_call.1} parent=1 // loop_footer
      %s15 = sadd.s32 1, %s11
    $region7: #{tpu_custom_call.1} parent=1 // loop_footer_branch
      %10 = sbr.rel target = $region3
    $region8: #{tpu_custom_call.1} parent=1 // loop_exit
      _
    %1723 = vsyncpa [#allocation4], 1
    %s1724 = scalar_lea.sflag [#allocation4], 1
    %1725 = vsyncpa %s1724, 1

</llo_original>
